<compile_context>
chip_gen: v6e
topology: v6e:2x2x1
jax: 0.10.0
libtpu: 0.0.40
codegen_flags: <defaults>
</compile_context>

<pallas_src>
import jax
import jax.numpy as jnp
from jax.experimental import pallas as pl
from jax.experimental.pallas import tpu as pltpu

L = 70          # input length (NCL: (N, 1, 70))
L1 = 35         # after Conv1d(k=4, s=2, p=1)
LP = 17         # after MaxPool1d(3, stride=2)
SLOPE = 0.2
EPS = 1e-5

# ---- packed weight-slab row layout (width 32, f32) --------------------------
WBIG_R = 0                 # rows 0:1088       fused cat/conv2/flatten/fc1 matrix
W1A_R = LP * 64            # rows 1088:1096    conv1 block-diag weight, lanes 0:32
W1B_R = W1A_R + 8          # rows 1096:1104    conv1 block-diag weight, lanes 32:64
VECA_R = W1B_R + 8         # rows 1104:1107    [conv1 bias | BN gamma | BN beta], x half
VECB_R = VECA_R + 8        # rows 1112:1115    [conv1 bias | BN gamma | BN beta], rec half
BEFF_R = VECB_R + 8        # row 1120          effective fc1 bias (conv2 bias folded in)
FC2W_R = BEFF_R + 1        # row 1121          fc2 weight
FC2B_R = BEFF_R + 2        # row 1122          fc2 bias (lane 0)
SLAB_ROWS = 1128           # padded to a multiple of 8 sublanes


def _leaky(v):
    # max(v, 0.2*v): 2 VALU ops per vreg.
    return jnp.maximum(v, SLOPE * v)


def discx_kernel(sig_ref, slab_ref, out_ref):
    """Whole forward in one grid step; both operands resident in VMEM."""
    n = sig_ref.shape[0]
    sig = sig_ref[...]                                   # (n, 36, 4) padded, even/odd split

    # --- rebuild the 64-lane packed constants (one lane-concat each) --------
    w1 = jnp.concatenate([slab_ref[W1A_R:W1A_R + 8, :],
                          slab_ref[W1B_R:W1B_R + 8, :]], axis=-1)     # (8, 64)
    vec = jnp.concatenate([slab_ref[VECA_R:VECA_R + 3, :],
                           slab_ref[VECB_R:VECB_R + 3, :]], axis=-1)  # (3, 64)
    b1, g, be = vec[0:1, :], vec[1:2, :], vec[2:3, :]

    # --- in-VMEM im2col for Conv1d(1,32,k=4,s=2,p=1): two sublane slices -----
    # sig[:, j, :] = (x_pad[2j], x_pad[2j+1], rec_pad[2j], rec_pad[2j+1])
    taps = jnp.concatenate([sig[:, 0:L1, :], sig[:, 1:L1 + 1, :]], axis=-1)  # (n, 35, 8)
    taps2 = taps.reshape(n * L1, 8)

    # --- conv1, both branches as ONE matmul (block-diag weight) + LeakyReLU --
    # output lanes 0:32 = branch x channels, 32:64 = branch rec channels.
    y = jnp.dot(taps2, w1, preferred_element_type=jnp.float32) + b1          # (n*35, 64)
    y = _leaky(y)

    # --- BatchNorm1d(32) per branch, training-mode batch stats, single pass --
    # TODO(synk): running-stat updates (training-only side effect) omitted.
    inv_cnt = 1.0 / float(n * L1)
    mean = jnp.sum(y, axis=0, keepdims=True) * inv_cnt                       # (1, 64)
    msq = jnp.sum(y * y, axis=0, keepdims=True) * inv_cnt
    var = msq - mean * mean
    scale = g * jax.lax.rsqrt(var + EPS)
    y = y * scale + (be - mean * scale)                                      # (n*35, 64)

    # --- MaxPool1d(3, stride=2) over time (sublane axis): 35 -> 17 ----------
    y3 = y.reshape(n, L1, 64)
    a = y3[:, 0:2 * LP, :].reshape(n, LP, 2, 64)        # rows 2t, 2t+1
    b = y3[:, 1:2 * LP + 1, :].reshape(n, LP, 2, 64)    # rows 2t+1, 2t+2
    pooled = jnp.maximum(jnp.maximum(a[:, :, 0, :], a[:, :, 1, :]),
                         b[:, :, 1, :])                                      # (n, 17, 64)

    # --- cat + Conv1d(32,8,4,s2,p1) + Flatten + Linear(136,32): ONE matmul ---
    # (the whole tail is affine in `pooled`; folded into W_big at pack time)
    flat = pooled.reshape(n, LP * 64)                                        # (n, 1088)
    h = jnp.dot(flat, slab_ref[WBIG_R:WBIG_R + LP * 64, :],
                preferred_element_type=jnp.float32) + slab_ref[BEFF_R:BEFF_R + 1, :]
    h = _leaky(h)                                                            # (n, 32)

    # --- Linear(32,1): VPU multiply + lane reduction (skip the MXU) ----------
    out_ref[...] = (jnp.sum(h * slab_ref[FC2W_R:FC2W_R + 1, :], axis=1, keepdims=True)
                    + slab_ref[FC2B_R:FC2B_R + 1, 0:1])


def pack_params(params):
    """One-time weight prep: everything the kernel needs in ONE (1128,32) slab."""
    f32 = lambda a: jnp.asarray(a, jnp.float32)
    hi = jax.lax.Precision.HIGHEST

    # Conv1d(1,32,4) weights (32,1,4) -> (4,32) [tap, out_ch] per branch.
    w1x = f32(params["conv1x_w"]).reshape(32, 4).T
    w1r = f32(params["conv1r_w"]).reshape(32, 4).T
    z32 = jnp.zeros((32,), jnp.float32)
    # Block-diagonal (8,64) weight; row order matches the in-kernel tap concat:
    # columns = [x_e, x_o, r_e, r_o] (from sig rows t) ++ same (from rows t+1).
    col_branch = (0, 0, 1, 1, 0, 0, 1, 1)
    col_tap = (0, 1, 0, 1, 2, 3, 2, 3)
    rows = []
    for br, k in zip(col_branch, col_tap):
        if br == 0:
            rows.append(jnp.concatenate([w1x[k], z32]))
        else:
            rows.append(jnp.concatenate([z32, w1r[k]]))
    w1blk = jnp.stack(rows)                                                   # (8, 64)

    b1 = jnp.concatenate([f32(params["conv1x_b"]), f32(params["conv1r_b"])])  # (64,)
    g = jnp.concatenate([f32(params["bnx_g"]), f32(params["bnr_g"])])
    be = jnp.concatenate([f32(params["bnx_b"]), f32(params["bnr_b"])])

    # ---- fold cat -> conv2 -> flatten -> fc1 into one (1088,32) affine map --
    w2 = f32(params["conv2_w"]); b2 = f32(params["conv2_b"])
    fc1w = f32(params["fc1_w"]); fc1b = f32(params["fc1_b"])

    def tail(pflat):
        # pflat: (B, 1088) flattened pooled activations, idx = t*64 + br*32 + ci.
        bsz = pflat.shape[0]
        p4 = pflat.reshape(bsz, LP, 2, 32)
        hx = jnp.transpose(p4[:, :, 0, :], (0, 2, 1))                        # (B,32,17)
        hr = jnp.transpose(p4[:, :, 1, :], (0, 2, 1))
        cat = jnp.concatenate([hx, hr], axis=2)                              # (B,32,34)
        c2 = jax.lax.conv_general_dilated(
            cat, w2, window_strides=(2,), padding=[(1, 1)],
            dimension_numbers=("NCH", "OIH", "NCH"), precision=hi)
        c2 = c2 + b2[None, :, None]                                          # (B,8,17)
        return jnp.dot(c2.reshape(bsz, 8 * LP), fc1w.T, precision=hi) + fc1b  # (B,32)

    beff = tail(jnp.zeros((1, LP * 64), jnp.float32))                        # (1, 32)
    wbig = tail(jnp.eye(LP * 64, dtype=jnp.float32)) - beff                  # (1088, 32)

    fc2w = f32(params["fc2_w"]).reshape(32)
    fc2b = f32(params["fc2_b"]).reshape(1)

    slab = jnp.zeros((SLAB_ROWS, 32), jnp.float32)
    slab = slab.at[WBIG_R:WBIG_R + LP * 64, :].set(wbig)
    slab = slab.at[W1A_R:W1A_R + 8, :].set(w1blk[:, 0:32])
    slab = slab.at[W1B_R:W1B_R + 8, :].set(w1blk[:, 32:64])
    slab = slab.at[VECA_R + 0, :].set(b1[0:32])
    slab = slab.at[VECA_R + 1, :].set(g[0:32])
    slab = slab.at[VECA_R + 2, :].set(be[0:32])
    slab = slab.at[VECB_R + 0, :].set(b1[32:64])
    slab = slab.at[VECB_R + 1, :].set(g[32:64])
    slab = slab.at[VECB_R + 2, :].set(be[32:64])
    slab = slab.at[BEFF_R, :].set(beff[0])
    slab = slab.at[FC2W_R, :].set(fc2w)
    slab = slab.at[FC2B_R, 0].set(fc2b[0])
    return slab


@jax.jit
def discriminator_x(x, rec, slab):
    """x, rec: (N, 1, 70) float32 in PyTorch NCL layout. Returns (N, 1)."""
    n = x.shape[0]
    # The only wrapper prep: pad (p=1) and even/odd-split the raw signals so
    # the kernel can build conv1 taps with plain sublane slices (no im2col
    # tensor, same byte count as the padded input).
    xp = jnp.pad(x[:, 0, :].astype(jnp.float32), ((0, 0), (1, 1))).reshape(n, 36, 2)
    rp = jnp.pad(rec[:, 0, :].astype(jnp.float32), ((0, 0), (1, 1))).reshape(n, 36, 2)
    sig = jnp.concatenate([xp, rp], axis=-1)                                 # (n, 36, 4)

    vmem = pl.BlockSpec(memory_space=pltpu.MemorySpace.VMEM)
    return pl.pallas_call(
        discx_kernel,
        out_shape=jax.ShapeDtypeStruct((n, 1), jnp.float32),
        in_specs=[vmem, vmem],
        out_specs=vmem,
    )(sig, slab)


def _reference(x, rec, params):
    """Pure-JAX mirror of the PyTorch forward (training-mode BatchNorm)."""
    hi = jax.lax.Precision.HIGHEST

    def conv1d(inp, w, b, stride, pad):
        y = jax.lax.conv_general_dilated(
            inp, w, window_strides=(stride,), padding=[(pad, pad)],
            dimension_numbers=("NCH", "OIH", "NCH"), precision=hi)
        return y + b[None, :, None]

    def leaky(v):
        return jnp.where(v > 0, v, SLOPE * v)

    def branch(inp, w, b, g, be):
        y = leaky(conv1d(inp.astype(jnp.float32), w, b, 2, 1))
        mean = jnp.mean(y, axis=(0, 2), keepdims=True)
        var = jnp.mean((y - mean) ** 2, axis=(0, 2), keepdims=True)
        y = (y - mean) * jax.lax.rsqrt(var + EPS) * g[None, :, None] + be[None, :, None]
        return jax.lax.reduce_window(y, -jnp.inf, jax.lax.max,
                                     (1, 1, 3), (1, 1, 2), "VALID")

    hx = branch(x, params["conv1x_w"], params["conv1x_b"],
                params["bnx_g"], params["bnx_b"])
    hr = branch(rec, params["conv1r_w"], params["conv1r_b"],
                params["bnr_g"], params["bnr_b"])
    cat = jnp.concatenate([hx, hr], axis=2)                        # (N, 32, 34)
    c2 = conv1d(cat, params["conv2_w"], params["conv2_b"], 2, 1)   # (N, 8, 17)
    flat = c2.reshape(c2.shape[0], -1)                             # channel-major
    h = leaky(jnp.dot(flat, params["fc1_w"].T, precision=hi) + params["fc1_b"])
    return jnp.dot(h, params["fc2_w"].T, precision=hi) + params["fc2_b"]


def init_params(key):
    ks = jax.random.split(key, 14)
    u = lambda k, shape, s: jax.random.uniform(k, shape, jnp.float32, -s, s)
    return {
        "conv1x_w": u(ks[0], (32, 1, 4), 0.5),
        "conv1x_b": u(ks[1], (32,), 0.5),
        "bnx_g": jax.random.uniform(ks[2], (32,), jnp.float32, 0.5, 1.5),
        "bnx_b": u(ks[3], (32,), 0.5),
        "conv1r_w": u(ks[4], (32, 1, 4), 0.5),
        "conv1r_b": u(ks[5], (32,), 0.5),
        "bnr_g": jax.random.uniform(ks[6], (32,), jnp.float32, 0.5, 1.5),
        "bnr_b": u(ks[7], (32,), 0.5),
        "conv2_w": u(ks[8], (8, 32, 4), 0.1),
        "conv2_b": u(ks[9], (8,), 0.1),
        "fc1_w": u(ks[10], (32, 136), 0.1),
        "fc1_b": u(ks[11], (32,), 0.1),
        "fc2_w": u(ks[12], (1, 32), 0.2),
        "fc2_b": u(ks[13], (1,), 0.2),
    }


if __name__ == "__main__":
    N = 2
    root = jax.random.PRNGKey(0)
    kx, kr, kp = jax.random.split(root, 3)
    x = jax.random.normal(kx, (N, 1, L), jnp.float32)
    rec = jax.random.normal(kr, (N, 1, L), jnp.float32)
    params = init_params(kp)

    slab = jax.block_until_ready(pack_params(params))        # one-time prep
    out = jax.block_until_ready(discriminator_x(x, rec, slab))
    assert out.shape == (N, 1) and out.dtype == jnp.float32

    # Sanity check vs. a pure-JAX reference.  Tolerance is loose because the
    # two in-kernel MXU dots run at default TPU matmul precision and the BN
    # variance is single-pass (E[x^2]-mean^2).
    ref = _reference(x, rec, params)
    assert jnp.allclose(out, ref, atol=5e-2, rtol=5e-2), (out, ref)
    print("KERNEL_OK")
</pallas_src>

<mosaic_0001>
module attributes {stable_mosaic.version = 11 : i64} {
  func.func @discx_kernel(%arg0: memref<2x36x4xf32, #tpu.memory_space<vmem>>, %arg1: memref<1128x32xf32, #tpu.memory_space<vmem>>, %arg2: memref<2x1xf32, #tpu.memory_space<vmem>>) attributes {dimension_semantics = [], scalar_prefetch = 0 : i64, scratch_operands = 0 : i64, tpu.core_type = #tpu.core_type<tc>} {
    %c0 = arith.constant 0 : index
    %c0_0 = arith.constant 0 : index
    %c0_1 = arith.constant 0 : index
    %0 = vector.load %arg0[%c0, %c0_0, %c0_1] : memref<2x36x4xf32, #tpu.memory_space<vmem>>, vector<2x36x4xf32>
    %c1088 = arith.constant 1088 : index
    %c0_2 = arith.constant 0 : index
    %1 = vector.load %arg1[%c1088, %c0_2] : memref<1128x32xf32, #tpu.memory_space<vmem>>, vector<8x32xf32>
    %c1096 = arith.constant 1096 : index
    %c0_3 = arith.constant 0 : index
    %2 = vector.load %arg1[%c1096, %c0_3] : memref<1128x32xf32, #tpu.memory_space<vmem>>, vector<8x32xf32>
    %3 = tpu.concatenate %1, %2 in 1 : vector<8x32xf32>, vector<8x32xf32> -> vector<8x64xf32>
    %c1104 = arith.constant 1104 : index
    %c0_4 = arith.constant 0 : index
    %4 = vector.load %arg1[%c1104, %c0_4] : memref<1128x32xf32, #tpu.memory_space<vmem>>, vector<3x32xf32>
    %c1112 = arith.constant 1112 : index
    %c0_5 = arith.constant 0 : index
    %5 = vector.load %arg1[%c1112, %c0_5] : memref<1128x32xf32, #tpu.memory_space<vmem>>, vector<3x32xf32>
    %6 = tpu.concatenate %4, %5 in 1 : vector<3x32xf32>, vector<3x32xf32> -> vector<3x64xf32>
    %7 = vector.extract_strided_slice %6 {offsets = [0, 0], sizes = [1, 64], strides = [1, 1]} : vector<3x64xf32> to vector<1x64xf32>
    %8 = vector.extract_strided_slice %6 {offsets = [1, 0], sizes = [1, 64], strides = [1, 1]} : vector<3x64xf32> to vector<1x64xf32>
    %9 = vector.extract_strided_slice %6 {offsets = [2, 0], sizes = [1, 64], strides = [1, 1]} : vector<3x64xf32> to vector<1x64xf32>
    %10 = vector.extract_strided_slice %0 {offsets = [0, 0, 0], sizes = [2, 35, 4], strides = [1, 1, 1]} : vector<2x36x4xf32> to vector<2x35x4xf32>
    %11 = vector.extract_strided_slice %0 {offsets = [0, 1, 0], sizes = [2, 35, 4], strides = [1, 1, 1]} : vector<2x36x4xf32> to vector<2x35x4xf32>
    %12 = tpu.concatenate %10, %11 in 2 : vector<2x35x4xf32>, vector<2x35x4xf32> -> vector<2x35x8xf32>
    %13 = vector.shape_cast %12 : vector<2x35x8xf32> to vector<70x8xf32>
    %cst = arith.constant dense<0.000000e+00> : vector<70x64xf32>
    %14 = tpu.matmul %13, %3, %cst {dimension_numbers = #tpu.dot_dimension_numbers<[1], [0], [0], [1], [0, 0, 1, 1], [], []>} : vector<70x8xf32>, vector<8x64xf32>, vector<70x64xf32> -> vector<70x64xf32>
    %15 = vector.broadcast %7 : vector<1x64xf32> to vector<70x64xf32>
    %16 = arith.addf %14, %15 : vector<70x64xf32>
    %cst_6 = arith.constant 2.000000e-01 : f32
    %17 = vector.broadcast %cst_6 : f32 to vector<70x64xf32>
    %18 = arith.mulf %17, %16 : vector<70x64xf32>
    %19 = arith.maximumf %16, %18 : vector<70x64xf32>
    %cst_7 = arith.constant dense<0.000000e+00> : vector<64xf32>
    %20 = vector.multi_reduction <add>, %19, %cst_7 [0] : vector<70x64xf32> to vector<64xf32>
    %21 = vector.shape_cast %20 : vector<64xf32> to vector<1x64xf32>
    %cst_8 = arith.constant 0.0142857144 : f32
    %22 = vector.broadcast %cst_8 : f32 to vector<1x64xf32>
    %23 = arith.mulf %21, %22 : vector<1x64xf32>
    %24 = arith.mulf %19, %19 : vector<70x64xf32>
    %cst_9 = arith.constant dense<0.000000e+00> : vector<64xf32>
    %25 = vector.multi_reduction <add>, %24, %cst_9 [0] : vector<70x64xf32> to vector<64xf32>
    %26 = vector.shape_cast %25 : vector<64xf32> to vector<1x64xf32>
    %cst_10 = arith.constant 0.0142857144 : f32
    %27 = vector.broadcast %cst_10 : f32 to vector<1x64xf32>
    %28 = arith.mulf %26, %27 : vector<1x64xf32>
    %29 = arith.mulf %23, %23 : vector<1x64xf32>
    %30 = arith.subf %28, %29 : vector<1x64xf32>
    %cst_11 = arith.constant 9.99999974E-6 : f32
    %31 = vector.broadcast %cst_11 : f32 to vector<1x64xf32>
    %32 = arith.addf %30, %31 : vector<1x64xf32>
    %33 = math.rsqrt %32 : vector<1x64xf32>
    %34 = arith.mulf %8, %33 : vector<1x64xf32>
    %35 = vector.broadcast %34 : vector<1x64xf32> to vector<70x64xf32>
    %36 = arith.mulf %19, %35 : vector<70x64xf32>
    %37 = arith.mulf %23, %34 : vector<1x64xf32>
    %38 = arith.subf %9, %37 : vector<1x64xf32>
    %39 = vector.broadcast %38 : vector<1x64xf32> to vector<70x64xf32>
    %40 = arith.addf %36, %39 : vector<70x64xf32>
    %41 = vector.shape_cast %40 : vector<70x64xf32> to vector<2x35x64xf32>
    %42 = vector.extract_strided_slice %41 {offsets = [0, 0, 0], sizes = [2, 34, 64], strides = [1, 1, 1]} : vector<2x35x64xf32> to vector<2x34x64xf32>
    %43 = vector.shape_cast %42 : vector<2x34x64xf32> to vector<2x17x2x64xf32>
    %44 = vector.extract_strided_slice %41 {offsets = [0, 1, 0], sizes = [2, 34, 64], strides = [1, 1, 1]} : vector<2x35x64xf32> to vector<2x34x64xf32>
    %45 = vector.shape_cast %44 : vector<2x34x64xf32> to vector<2x17x2x64xf32>
    %46 = vector.extract_strided_slice %43 {offsets = [0, 0, 0, 0], sizes = [2, 17, 1, 64], strides = [1, 1, 1, 1]} : vector<2x17x2x64xf32> to vector<2x17x1x64xf32>
    %47 = vector.shape_cast %46 : vector<2x17x1x64xf32> to vector<2x17x64xf32>
    %48 = vector.extract_strided_slice %43 {offsets = [0, 0, 1, 0], sizes = [2, 17, 1, 64], strides = [1, 1, 1, 1]} : vector<2x17x2x64xf32> to vector<2x17x1x64xf32>
    %49 = vector.shape_cast %48 : vector<2x17x1x64xf32> to vector<2x17x64xf32>
    %50 = arith.maximumf %47, %49 : vector<2x17x64xf32>
    %51 = vector.extract_strided_slice %45 {offsets = [0, 0, 1, 0], sizes = [2, 17, 1, 64], strides = [1, 1, 1, 1]} : vector<2x17x2x64xf32> to vector<2x17x1x64xf32>
    %52 = vector.shape_cast %51 : vector<2x17x1x64xf32> to vector<2x17x64xf32>
    %53 = arith.maximumf %50, %52 : vector<2x17x64xf32>
    %54 = vector.shape_cast %53 : vector<2x17x64xf32> to vector<2x1088xf32>
    %c0_12 = arith.constant 0 : index
    %c0_13 = arith.constant 0 : index
    %55 = vector.load %arg1[%c0_12, %c0_13] : memref<1128x32xf32, #tpu.memory_space<vmem>>, vector<1088x32xf32>
    %cst_14 = arith.constant dense<0.000000e+00> : vector<2x32xf32>
    %56 = tpu.matmul %54, %55, %cst_14 {dimension_numbers = #tpu.dot_dimension_numbers<[1], [0], [0], [1], [0, 0, 1, 1], [], []>} : vector<2x1088xf32>, vector<1088x32xf32>, vector<2x32xf32> -> vector<2x32xf32>
    %c1120 = arith.constant 1120 : index
    %c0_15 = arith.constant 0 : index
    %57 = vector.load %arg1[%c1120, %c0_15] : memref<1128x32xf32, #tpu.memory_space<vmem>>, vector<1x32xf32>
    %58 = vector.broadcast %57 : vector<1x32xf32> to vector<2x32xf32>
    %59 = arith.addf %56, %58 : vector<2x32xf32>
    %cst_16 = arith.constant 2.000000e-01 : f32
    %60 = vector.broadcast %cst_16 : f32 to vector<2x32xf32>
    %61 = arith.mulf %60, %59 : vector<2x32xf32>
    %62 = arith.maximumf %59, %61 : vector<2x32xf32>
    %c1121 = arith.constant 1121 : index
    %c0_17 = arith.constant 0 : index
    %63 = vector.load %arg1[%c1121, %c0_17] : memref<1128x32xf32, #tpu.memory_space<vmem>>, vector<1x32xf32>
    %64 = vector.broadcast %63 : vector<1x32xf32> to vector<2x32xf32>
    %65 = arith.mulf %62, %64 : vector<2x32xf32>
    %cst_18 = arith.constant dense<0.000000e+00> : vector<2xf32>
    %66 = vector.multi_reduction <add>, %65, %cst_18 [1] : vector<2x32xf32> to vector<2xf32>
    %67 = vector.shape_cast %66 : vector<2xf32> to vector<2x1xf32>
    %c1122 = arith.constant 1122 : index
    %c0_19 = arith.constant 0 : index
    %68 = vector.load %arg1[%c1122, %c0_19] : memref<1128x32xf32, #tpu.memory_space<vmem>>, vector<1x1xf32>
    %69 = vector.broadcast %68 : vector<1x1xf32> to vector<2x1xf32>
    %70 = arith.addf %67, %69 : vector<2x1xf32>
    %c0_20 = arith.constant 0 : index
    %c0_21 = arith.constant 0 : index
    %71 = vector.load %arg2[%c0_20, %c0_21] : memref<2x1xf32, #tpu.memory_space<vmem>>, vector<2x1xf32>
    tpu.vector_store %arg2[%c0_20, %c0_21], %70 {strides = array<i32>} : memref<2x1xf32, #tpu.memory_space<vmem>>, vector<2x1xf32>,
    return
  }
}

</mosaic_0001>

<llo_original>
// kernel: discriminator_x.1
$region0: #{discriminator_x.1}
  #allocation0 [shape = 'u32[]', space=smem, size = 0x4, offset = 0x4, fixed_abs, tag = 'smem constant byte address 0x4 - core index']
  #allocation1 [shape = 'u32[144,128]{1,0:T(1,128)}', space=vmem, size = 0x12000, scoped, tag = 'internal scratch']
  %s0 = inlined_call_operand.vmem [shape: f32[2,36,4], index: 0, kind: input, shape index: {}]
  %s1 = inlined_call_operand.vmem [shape: f32[1128,32], index: 1, kind: input, shape index: {}]
  %s2 = inlined_call_operand.vmem [shape: f32[2,1], index: 2, kind: output, shape index: {}]
  %s3 = sld [smem:[#allocation0]]
  $region18: #{discriminator_x.1} parent=0
    _
  %s5 = ssub.s32 1, %s3
  %s6 = scalar_select 0, %s5, %s3
  // Predicated region
  $region2: #{discriminator_x.1} parent=0 // pred_check
    _
  $region3: #{discriminator_x.1} parent=0 // pred_check_branch
    %8 = sbr.rel (0) target = $region5
  $region4: #{discriminator_x.1} parent=0 // pred_region
    _
  $region5: #{discriminator_x.1} parent=0 // pred_fallthru
    _
  // Predicated region
  $region6: #{discriminator_x.1} parent=0 // pred_check
    _
  $region7: #{discriminator_x.1} parent=0 // pred_check_branch
    %10 = sbr.rel (0) target = $region9
  $region8: #{discriminator_x.1} parent=0 // pred_region
    _
  $region9: #{discriminator_x.1} parent=0 // pred_fallthru
    _
  %v11 = vld [vmem:[%s0] sm:$0xff]
  %v12 = vld [vmem:[%s0 + $0x8] sm:$0xff]
  %v13 = vld [vmem:[%s0 + $0x10] sm:$0xff]
  %v14 = vld [vmem:[%s0 + $0x18] sm:$0xff]
  %v15 = vld [vmem:[%s0 + $0x20] sm:$0xf]
  %v16 = vld [vmem:[%s0 + $0x28] sm:$0xff]
  %v17 = vld [vmem:[%s0 + $0x30] sm:$0xff]
  %v18 = vld [vmem:[%s0 + $0x38] sm:$0xff]
  %v19 = vld [vmem:[%s0 + $0x40] sm:$0xff]
  %v20 = vld [vmem:[%s0 + $0x48] sm:$0xf]
  %v21 = vld [vmem:[%s1 + $0x440] sm:$0xff]
  %v22 = vld [vmem:[%s1 + $0x448] sm:$0xff]
  %24 = vrot.lane.b32.xlu0 %v22, 32
  %v25 = vpop.permute.xlu0 %24
  %vm27 = vcmask 261120
  %v28 = vsel %vm27, %v21, %v25
  %v29 = vld [vmem:[%s1 + $0x450] sm:$0x7]
  %v30 = vld [vmem:[%s1 + $0x458] sm:$0x7]
  %32 = vrot.lane.b32.xlu0 %v30, 32
  %v33 = vpop.permute.xlu0 %32
  %v35 = vsel %vm27, %v29, %v33
  %vm46 = vcmask 1046528
  %v47 = vrot.slane %v11, 1
  %v48 = vrot.slane %v12, 1
  %v49 = vsel %vm46, %v47, %v48
  %v50 = vrot.slane %v13, 1
  %v51 = vsel %vm46, %v48, %v50
  %v52 = vrot.slane %v14, 1
  %v53 = vsel %vm46, %v50, %v52
  %v54 = vrot.slane %v15, 1
  %v55 = vsel %vm46, %v52, %v54
  %v56 = vrot.slane %v16, 1
  %v57 = vrot.slane %v17, 1
  %v58 = vsel %vm46, %v56, %v57
  %v59 = vrot.slane %v18, 1
  %v60 = vsel %vm46, %v57, %v59
  %v61 = vrot.slane %v19, 1
  %v62 = vsel %vm46, %v59, %v61
  %v63 = vrot.slane %v20, 1
  %v64 = vsel %vm46, %v61, %v63
  %65 = vrot.lane.b32.xlu0 %v49, 4
  %v66 = vpop.permute.xlu0 %65
  %67 = vrot.lane.b32.xlu0 %v51, 4
  %v68 = vpop.permute.xlu0 %67
  %69 = vrot.lane.b32.xlu0 %v53, 4
  %v70 = vpop.permute.xlu0 %69
  %71 = vrot.lane.b32.xlu0 %v55, 4
  %v72 = vpop.permute.xlu0 %71
  %73 = vrot.lane.b32.xlu0 %v54, 4
  %v74 = vpop.permute.xlu0 %73
  %75 = vrot.lane.b32.xlu0 %v58, 4
  %v76 = vpop.permute.xlu0 %75
  %77 = vrot.lane.b32.xlu0 %v60, 4
  %v78 = vpop.permute.xlu0 %77
  %79 = vrot.lane.b32.xlu0 %v62, 4
  %v80 = vpop.permute.xlu0 %79
  %81 = vrot.lane.b32.xlu0 %v64, 4
  %v82 = vpop.permute.xlu0 %81
  %83 = vrot.lane.b32.xlu0 %v63, 4
  %v84 = vpop.permute.xlu0 %83
  %vm95 = vcmask 31744
  %v96 = vsel %vm95, %v11, %v66
  %v97 = vsel %vm95, %v12, %v68
  %v98 = vsel %vm95, %v13, %v70
  %v99 = vsel %vm95, %v14, %v72
  %v100 = vsel %vm95, %v15, %v74
  %v101 = vsel %vm95, %v16, %v76
  %v102 = vsel %vm95, %v17, %v78
  %v103 = vsel %vm95, %v18, %v80
  %v104 = vsel %vm95, %v19, %v82
  %v105 = vsel %vm95, %v20, %v84
  %v116 = vcombine.high %v96, %v96
  %v118 = vunpack.c.l.s4 1966171168
  %v119 = vunpack.c.0.s8 %v118
  %v120 = vlaneseq
  %v121 = vshrl.u32 %v120, 7
  %v122 = vsub.s32 %v119, %v121
  %v123 = vrot.slane %v96, %v122
  %v125 = vunpack.c.l.s4 1966171168
  %v126 = vunpack.c.0.s8 %v125
  %v127 = vlaneseq
  %v128 = vshrl.u32 %v127, 7
  %v129 = vsub.s32 %v126, %v128
  %v130 = vrot.slane %v116, %v129
  %v131 = vcombine.high %v123, %v123
  %v132 = vcombine.high %v130, %v130
  %v134 = vunpack.c.l.s4 1966171168
  %v135 = vunpack.c.0.s8 %v134
  %v136 = vlaneseq
  %v137 = vshrl.u32 %v136, 7
  %v138 = vsub.s32 %v135, %v137
  %v139 = vrot.slane %v123, %v138
  %v141 = vunpack.c.l.s4 1966171168
  %v142 = vunpack.c.0.s8 %v141
  %v143 = vlaneseq
  %v144 = vshrl.u32 %v143, 7
  %v145 = vsub.s32 %v142, %v144
  %v146 = vrot.slane %v130, %v145
  %v148 = vunpack.c.l.s4 1966171168
  %v149 = vunpack.c.0.s8 %v148
  %v150 = vlaneseq
  %v151 = vshrl.u32 %v150, 7
  %v152 = vsub.s32 %v149, %v151
  %v153 = vrot.slane %v131, %v152
  %v155 = vunpack.c.l.s4 1966171168
  %v156 = vunpack.c.0.s8 %v155
  %v157 = vlaneseq
  %v158 = vshrl.u32 %v157, 7
  %v159 = vsub.s32 %v156, %v158
  %v160 = vrot.slane %v132, %v159
  %v161 = vcombine.high %v139, %v139
  %v162 = vcombine.high %v146, %v146
  %v163 = vcombine.high %v153, %v153
  %v164 = vcombine.high %v160, %v160
  %v165 = vcombine.high %v97, %v97
  %v167 = vunpack.c.l.s4 1966171168
  %v168 = vunpack.c.0.s8 %v167
  %v169 = vlaneseq
  %v170 = vshrl.u32 %v169, 7
  %v171 = vsub.s32 %v168, %v170
  %v172 = vrot.slane %v97, %v171
  %v174 = vunpack.c.l.s4 1966171168
  %v175 = vunpack.c.0.s8 %v174
  %v176 = vlaneseq
  %v177 = vshrl.u32 %v176, 7
  %v178 = vsub.s32 %v175, %v177
  %v179 = vrot.slane %v165, %v178
  %v180 = vcombine.high %v172, %v172
  %v181 = vcombine.high %v179, %v179
  %v183 = vunpack.c.l.s4 1966171168
  %v184 = vunpack.c.0.s8 %v183
  %v185 = vlaneseq
  %v186 = vshrl.u32 %v185, 7
  %v187 = vsub.s32 %v184, %v186
  %v188 = vrot.slane %v172, %v187
  %v190 = vunpack.c.l.s4 1966171168
  %v191 = vunpack.c.0.s8 %v190
  %v192 = vlaneseq
  %v193 = vshrl.u32 %v192, 7
  %v194 = vsub.s32 %v191, %v193
  %v195 = vrot.slane %v179, %v194
  %v197 = vunpack.c.l.s4 1966171168
  %v198 = vunpack.c.0.s8 %v197
  %v199 = vlaneseq
  %v200 = vshrl.u32 %v199, 7
  %v201 = vsub.s32 %v198, %v200
  %v202 = vrot.slane %v180, %v201
  %v204 = vunpack.c.l.s4 1966171168
  %v205 = vunpack.c.0.s8 %v204
  %v206 = vlaneseq
  %v207 = vshrl.u32 %v206, 7
  %v208 = vsub.s32 %v205, %v207
  %v209 = vrot.slane %v181, %v208
  %v210 = vcombine.high %v188, %v188
  %v211 = vcombine.high %v195, %v195
  %v212 = vcombine.high %v202, %v202
  %v213 = vcombine.high %v209, %v209
  %v214 = vcombine.high %v98, %v98
  %v216 = vunpack.c.l.s4 1966171168
  %v217 = vunpack.c.0.s8 %v216
  %v218 = vlaneseq
  %v219 = vshrl.u32 %v218, 7
  %v220 = vsub.s32 %v217, %v219
  %v221 = vrot.slane %v98, %v220
  %v223 = vunpack.c.l.s4 1966171168
  %v224 = vunpack.c.0.s8 %v223
  %v225 = vlaneseq
  %v226 = vshrl.u32 %v225, 7
  %v227 = vsub.s32 %v224, %v226
  %v228 = vrot.slane %v214, %v227
  %v229 = vcombine.high %v221, %v221
  %v230 = vcombine.high %v228, %v228
  %v232 = vunpack.c.l.s4 1966171168
  %v233 = vunpack.c.0.s8 %v232
  %v234 = vlaneseq
  %v235 = vshrl.u32 %v234, 7
  %v236 = vsub.s32 %v233, %v235
  %v237 = vrot.slane %v221, %v236
  %v239 = vunpack.c.l.s4 1966171168
  %v240 = vunpack.c.0.s8 %v239
  %v241 = vlaneseq
  %v242 = vshrl.u32 %v241, 7
  %v243 = vsub.s32 %v240, %v242
  %v244 = vrot.slane %v228, %v243
  %v246 = vunpack.c.l.s4 1966171168
  %v247 = vunpack.c.0.s8 %v246
  %v248 = vlaneseq
  %v249 = vshrl.u32 %v248, 7
  %v250 = vsub.s32 %v247, %v249
  %v251 = vrot.slane %v229, %v250
  %v253 = vunpack.c.l.s4 1966171168
  %v254 = vunpack.c.0.s8 %v253
  %v255 = vlaneseq
  %v256 = vshrl.u32 %v255, 7
  %v257 = vsub.s32 %v254, %v256
  %v258 = vrot.slane %v230, %v257
  %v259 = vcombine.high %v237, %v237
  %v260 = vcombine.high %v244, %v244
  %v261 = vcombine.high %v251, %v251
  %v262 = vcombine.high %v258, %v258
  %v263 = vcombine.high %v99, %v99
  %v265 = vunpack.c.l.s4 1966171168
  %v266 = vunpack.c.0.s8 %v265
  %v267 = vlaneseq
  %v268 = vshrl.u32 %v267, 7
  %v269 = vsub.s32 %v266, %v268
  %v270 = vrot.slane %v99, %v269
  %v272 = vunpack.c.l.s4 1966171168
  %v273 = vunpack.c.0.s8 %v272
  %v274 = vlaneseq
  %v275 = vshrl.u32 %v274, 7
  %v276 = vsub.s32 %v273, %v275
  %v277 = vrot.slane %v263, %v276
  %v278 = vcombine.high %v270, %v270
  %v279 = vcombine.high %v277, %v277
  %v281 = vunpack.c.l.s4 1966171168
  %v282 = vunpack.c.0.s8 %v281
  %v283 = vlaneseq
  %v284 = vshrl.u32 %v283, 7
  %v285 = vsub.s32 %v282, %v284
  %v286 = vrot.slane %v270, %v285
  %v288 = vunpack.c.l.s4 1966171168
  %v289 = vunpack.c.0.s8 %v288
  %v290 = vlaneseq
  %v291 = vshrl.u32 %v290, 7
  %v292 = vsub.s32 %v289, %v291
  %v293 = vrot.slane %v277, %v292
  %v295 = vunpack.c.l.s4 1966171168
  %v296 = vunpack.c.0.s8 %v295
  %v297 = vlaneseq
  %v298 = vshrl.u32 %v297, 7
  %v299 = vsub.s32 %v296, %v298
  %v300 = vrot.slane %v278, %v299
  %v302 = vunpack.c.l.s4 1966171168
  %v303 = vunpack.c.0.s8 %v302
  %v304 = vlaneseq
  %v305 = vshrl.u32 %v304, 7
  %v306 = vsub.s32 %v303, %v305
  %v307 = vrot.slane %v279, %v306
  %v308 = vcombine.high %v286, %v286
  %v309 = vcombine.high %v293, %v293
  %v310 = vcombine.high %v300, %v300
  %v311 = vcombine.high %v307, %v307
  %v313 = vunpack.c.l.s4 1966171168
  %v314 = vunpack.c.0.s8 %v313
  %v315 = vlaneseq
  %v316 = vshrl.u32 %v315, 7
  %v317 = vsub.s32 %v314, %v316
  %v318 = vrot.slane %v100, %v317
  %v319 = vcombine.high %v318, %v318
  %v321 = vunpack.c.l.s4 1966171168
  %v322 = vunpack.c.0.s8 %v321
  %v323 = vlaneseq
  %v324 = vshrl.u32 %v323, 7
  %v325 = vsub.s32 %v322, %v324
  %v326 = vrot.slane %v318, %v325
  %v328 = vunpack.c.l.s4 1966171168
  %v329 = vunpack.c.0.s8 %v328
  %v330 = vlaneseq
  %v331 = vshrl.u32 %v330, 7
  %v332 = vsub.s32 %v329, %v331
  %v333 = vrot.slane %v319, %v332
  %v334 = vcombine.high %v326, %v326
  %v335 = vcombine.high %v101, %v101
  %v337 = vunpack.c.l.s4 1966171168
  %v338 = vunpack.c.0.s8 %v337
  %v339 = vlaneseq
  %v340 = vshrl.u32 %v339, 7
  %v341 = vsub.s32 %v338, %v340
  %v342 = vrot.slane %v101, %v341
  %v344 = vunpack.c.l.s4 1966171168
  %v345 = vunpack.c.0.s8 %v344
  %v346 = vlaneseq
  %v347 = vshrl.u32 %v346, 7
  %v348 = vsub.s32 %v345, %v347
  %v349 = vrot.slane %v335, %v348
  %v350 = vcombine.high %v342, %v342
  %v351 = vcombine.high %v349, %v349
  %v353 = vunpack.c.l.s4 1966171168
  %v354 = vunpack.c.0.s8 %v353
  %v355 = vlaneseq
  %v356 = vshrl.u32 %v355, 7
  %v357 = vsub.s32 %v354, %v356
  %v358 = vrot.slane %v342, %v357
  %v360 = vunpack.c.l.s4 1966171168
  %v361 = vunpack.c.0.s8 %v360
  %v362 = vlaneseq
  %v363 = vshrl.u32 %v362, 7
  %v364 = vsub.s32 %v361, %v363
  %v365 = vrot.slane %v349, %v364
  %v367 = vunpack.c.l.s4 1966171168
  %v368 = vunpack.c.0.s8 %v367
  %v369 = vlaneseq
  %v370 = vshrl.u32 %v369, 7
  %v371 = vsub.s32 %v368, %v370
  %v372 = vrot.slane %v350, %v371
  %v374 = vunpack.c.l.s4 1966171168
  %v375 = vunpack.c.0.s8 %v374
  %v376 = vlaneseq
  %v377 = vshrl.u32 %v376, 7
  %v378 = vsub.s32 %v375, %v377
  %v379 = vrot.slane %v351, %v378
  %v380 = vcombine.high %v358, %v358
  %v381 = vcombine.high %v365, %v365
  %v382 = vcombine.high %v372, %v372
  %v383 = vcombine.high %v379, %v379
  %v384 = vcombine.high %v102, %v102
  %v386 = vunpack.c.l.s4 1966171168
  %v387 = vunpack.c.0.s8 %v386
  %v388 = vlaneseq
  %v389 = vshrl.u32 %v388, 7
  %v390 = vsub.s32 %v387, %v389
  %v391 = vrot.slane %v102, %v390
  %v393 = vunpack.c.l.s4 1966171168
  %v394 = vunpack.c.0.s8 %v393
  %v395 = vlaneseq
  %v396 = vshrl.u32 %v395, 7
  %v397 = vsub.s32 %v394, %v396
  %v398 = vrot.slane %v384, %v397
  %v399 = vcombine.high %v391, %v391
  %v400 = vcombine.high %v398, %v398
  %v402 = vunpack.c.l.s4 1966171168
  %v403 = vunpack.c.0.s8 %v402
  %v404 = vlaneseq
  %v405 = vshrl.u32 %v404, 7
  %v406 = vsub.s32 %v403, %v405
  %v407 = vrot.slane %v391, %v406
  %v409 = vunpack.c.l.s4 1966171168
  %v410 = vunpack.c.0.s8 %v409
  %v411 = vlaneseq
  %v412 = vshrl.u32 %v411, 7
  %v413 = vsub.s32 %v410, %v412
  %v414 = vrot.slane %v398, %v413
  %v416 = vunpack.c.l.s4 1966171168
  %v417 = vunpack.c.0.s8 %v416
  %v418 = vlaneseq
  %v419 = vshrl.u32 %v418, 7
  %v420 = vsub.s32 %v417, %v419
  %v421 = vrot.slane %v399, %v420
  %v423 = vunpack.c.l.s4 1966171168
  %v424 = vunpack.c.0.s8 %v423
  %v425 = vlaneseq
  %v426 = vshrl.u32 %v425, 7
  %v427 = vsub.s32 %v424, %v426
  %v428 = vrot.slane %v400, %v427
  %v429 = vcombine.high %v407, %v407
  %v430 = vcombine.high %v414, %v414
  %v431 = vcombine.high %v421, %v421
  %v432 = vcombine.high %v428, %v428
  %v433 = vcombine.high %v103, %v103
  %v435 = vunpack.c.l.s4 1966171168
  %v436 = vunpack.c.0.s8 %v435
  %v437 = vlaneseq
  %v438 = vshrl.u32 %v437, 7
  %v439 = vsub.s32 %v436, %v438
  %v440 = vrot.slane %v103, %v439
  %v442 = vunpack.c.l.s4 1966171168
  %v443 = vunpack.c.0.s8 %v442
  %v444 = vlaneseq
  %v445 = vshrl.u32 %v444, 7
  %v446 = vsub.s32 %v443, %v445
  %v447 = vrot.slane %v433, %v446
  %v448 = vcombine.high %v440, %v440
  %v449 = vcombine.high %v447, %v447
  %v451 = vunpack.c.l.s4 1966171168
  %v452 = vunpack.c.0.s8 %v451
  %v453 = vlaneseq
  %v454 = vshrl.u32 %v453, 7
  %v455 = vsub.s32 %v452, %v454
  %v456 = vrot.slane %v440, %v455
  %v458 = vunpack.c.l.s4 1966171168
  %v459 = vunpack.c.0.s8 %v458
  %v460 = vlaneseq
  %v461 = vshrl.u32 %v460, 7
  %v462 = vsub.s32 %v459, %v461
  %v463 = vrot.slane %v447, %v462
  %v465 = vunpack.c.l.s4 1966171168
  %v466 = vunpack.c.0.s8 %v465
  %v467 = vlaneseq
  %v468 = vshrl.u32 %v467, 7
  %v469 = vsub.s32 %v466, %v468
  %v470 = vrot.slane %v448, %v469
  %v472 = vunpack.c.l.s4 1966171168
  %v473 = vunpack.c.0.s8 %v472
  %v474 = vlaneseq
  %v475 = vshrl.u32 %v474, 7
  %v476 = vsub.s32 %v473, %v475
  %v477 = vrot.slane %v449, %v476
  %v478 = vcombine.high %v456, %v456
  %v479 = vcombine.high %v463, %v463
  %v480 = vcombine.high %v470, %v470
  %v481 = vcombine.high %v477, %v477
  %v482 = vcombine.high %v104, %v104
  %v484 = vunpack.c.l.s4 1966171168
  %v485 = vunpack.c.0.s8 %v484
  %v486 = vlaneseq
  %v487 = vshrl.u32 %v486, 7
  %v488 = vsub.s32 %v485, %v487
  %v489 = vrot.slane %v104, %v488
  %v491 = vunpack.c.l.s4 1966171168
  %v492 = vunpack.c.0.s8 %v491
  %v493 = vlaneseq
  %v494 = vshrl.u32 %v493, 7
  %v495 = vsub.s32 %v492, %v494
  %v496 = vrot.slane %v482, %v495
  %v497 = vcombine.high %v489, %v489
  %v498 = vcombine.high %v496, %v496
  %v500 = vunpack.c.l.s4 1966171168
  %v501 = vunpack.c.0.s8 %v500
  %v502 = vlaneseq
  %v503 = vshrl.u32 %v502, 7
  %v504 = vsub.s32 %v501, %v503
  %v505 = vrot.slane %v489, %v504
  %v507 = vunpack.c.l.s4 1966171168
  %v508 = vunpack.c.0.s8 %v507
  %v509 = vlaneseq
  %v510 = vshrl.u32 %v509, 7
  %v511 = vsub.s32 %v508, %v510
  %v512 = vrot.slane %v496, %v511
  %v514 = vunpack.c.l.s4 1966171168
  %v515 = vunpack.c.0.s8 %v514
  %v516 = vlaneseq
  %v517 = vshrl.u32 %v516, 7
  %v518 = vsub.s32 %v515, %v517
  %v519 = vrot.slane %v497, %v518
  %v521 = vunpack.c.l.s4 1966171168
  %v522 = vunpack.c.0.s8 %v521
  %v523 = vlaneseq
  %v524 = vshrl.u32 %v523, 7
  %v525 = vsub.s32 %v522, %v524
  %v526 = vrot.slane %v498, %v525
  %v527 = vcombine.high %v505, %v505
  %v528 = vcombine.high %v512, %v512
  %v529 = vcombine.high %v519, %v519
  %v530 = vcombine.high %v526, %v526
  %v532 = vunpack.c.l.s4 1966171168
  %v533 = vunpack.c.0.s8 %v532
  %v534 = vlaneseq
  %v535 = vshrl.u32 %v534, 7
  %v536 = vsub.s32 %v533, %v535
  %v537 = vrot.slane %v105, %v536
  %v538 = vcombine.high %v537, %v537
  %v540 = vunpack.c.l.s4 1966171168
  %v541 = vunpack.c.0.s8 %v540
  %v542 = vlaneseq
  %v543 = vshrl.u32 %v542, 7
  %v544 = vsub.s32 %v541, %v543
  %v545 = vrot.slane %v537, %v544
  %v547 = vunpack.c.l.s4 1966171168
  %v548 = vunpack.c.0.s8 %v547
  %v549 = vlaneseq
  %v550 = vshrl.u32 %v549, 7
  %v551 = vsub.s32 %v548, %v550
  %v552 = vrot.slane %v538, %v551
  %v553 = vcombine.high %v545, %v545
  %v554 = vlaneseq
  %v555 = vshrl.u32 %v554, 7
  %v556 = vsub.s32 0, %v555
  %v557 = vrot.slane %v35, %v556
  %v558 = vcombine.low %v139, %v153
  %v559 = vcombine.low %v161, %v163
  %v560 = vcombine.low %v146, %v160
  %v561 = vcombine.low %v162, %v164
  %v563 = vunpack.c.l.s4 1966171168
  %v564 = vunpack.c.0.s8 %v563
  %v565 = vlaneseq
  %v566 = vshrl.u32 %v565, 7
  %v567 = vsub.s32 %v564, %v566
  %v568 = vrot.slane %v558, %v567
  %v570 = vunpack.c.l.s4 1966171168
  %v571 = vunpack.c.0.s8 %v570
  %v572 = vlaneseq
  %v573 = vshrl.u32 %v572, 7
  %v574 = vsub.s32 %v571, %v573
  %v575 = vrot.slane %v559, %v574
  %v577 = vunpack.c.l.s4 1966171168
  %v578 = vunpack.c.0.s8 %v577
  %v579 = vlaneseq
  %v580 = vshrl.u32 %v579, 7
  %v581 = vsub.s32 %v578, %v580
  %v582 = vrot.slane %v560, %v581
  %v584 = vunpack.c.l.s4 1966171168
  %v585 = vunpack.c.0.s8 %v584
  %v586 = vlaneseq
  %v587 = vshrl.u32 %v586, 7
  %v588 = vsub.s32 %v585, %v587
  %v589 = vrot.slane %v561, %v588
  %v590 = vcombine.low %v568, %v575
  %v591 = vcombine.low %v582, %v589
  %v593 = vunpack.c.l.s4 1966171168
  %v594 = vunpack.c.0.s8 %v593
  %v595 = vlaneseq
  %v596 = vshrl.u32 %v595, 7
  %v597 = vsub.s32 %v594, %v596
  %v598 = vrot.slane %v590, %v597
  %v600 = vunpack.c.l.s4 1966171168
  %v601 = vunpack.c.0.s8 %v600
  %v602 = vlaneseq
  %v603 = vshrl.u32 %v602, 7
  %v604 = vsub.s32 %v601, %v603
  %v605 = vrot.slane %v591, %v604
  %v606 = vcombine.low %v598, %v605
  %v607 = vcombine.low %v188, %v202
  %v608 = vcombine.low %v210, %v212
  %v609 = vcombine.low %v195, %v209
  %v610 = vcombine.low %v211, %v213
  %v612 = vunpack.c.l.s4 1966171168
  %v613 = vunpack.c.0.s8 %v612
  %v614 = vlaneseq
  %v615 = vshrl.u32 %v614, 7
  %v616 = vsub.s32 %v613, %v615
  %v617 = vrot.slane %v607, %v616
  %v619 = vunpack.c.l.s4 1966171168
  %v620 = vunpack.c.0.s8 %v619
  %v621 = vlaneseq
  %v622 = vshrl.u32 %v621, 7
  %v623 = vsub.s32 %v620, %v622
  %v624 = vrot.slane %v608, %v623
  %v626 = vunpack.c.l.s4 1966171168
  %v627 = vunpack.c.0.s8 %v626
  %v628 = vlaneseq
  %v629 = vshrl.u32 %v628, 7
  %v630 = vsub.s32 %v627, %v629
  %v631 = vrot.slane %v609, %v630
  %v633 = vunpack.c.l.s4 1966171168
  %v634 = vunpack.c.0.s8 %v633
  %v635 = vlaneseq
  %v636 = vshrl.u32 %v635, 7
  %v637 = vsub.s32 %v634, %v636
  %v638 = vrot.slane %v610, %v637
  %v639 = vcombine.low %v617, %v624
  %v640 = vcombine.low %v631, %v638
  %v642 = vunpack.c.l.s4 1966171168
  %v643 = vunpack.c.0.s8 %v642
  %v644 = vlaneseq
  %v645 = vshrl.u32 %v644, 7
  %v646 = vsub.s32 %v643, %v645
  %v647 = vrot.slane %v639, %v646
  %v649 = vunpack.c.l.s4 1966171168
  %v650 = vunpack.c.0.s8 %v649
  %v651 = vlaneseq
  %v652 = vshrl.u32 %v651, 7
  %v653 = vsub.s32 %v650, %v652
  %v654 = vrot.slane %v640, %v653
  %v655 = vcombine.low %v647, %v654
  %v656 = vcombine.low %v237, %v251
  %v657 = vcombine.low %v259, %v261
  %v658 = vcombine.low %v244, %v258
  %v659 = vcombine.low %v260, %v262
  %v661 = vunpack.c.l.s4 1966171168
  %v662 = vunpack.c.0.s8 %v661
  %v663 = vlaneseq
  %v664 = vshrl.u32 %v663, 7
  %v665 = vsub.s32 %v662, %v664
  %v666 = vrot.slane %v656, %v665
  %v668 = vunpack.c.l.s4 1966171168
  %v669 = vunpack.c.0.s8 %v668
  %v670 = vlaneseq
  %v671 = vshrl.u32 %v670, 7
  %v672 = vsub.s32 %v669, %v671
  %v673 = vrot.slane %v657, %v672
  %v675 = vunpack.c.l.s4 1966171168
  %v676 = vunpack.c.0.s8 %v675
  %v677 = vlaneseq
  %v678 = vshrl.u32 %v677, 7
  %v679 = vsub.s32 %v676, %v678
  %v680 = vrot.slane %v658, %v679
  %v682 = vunpack.c.l.s4 1966171168
  %v683 = vunpack.c.0.s8 %v682
  %v684 = vlaneseq
  %v685 = vshrl.u32 %v684, 7
  %v686 = vsub.s32 %v683, %v685
  %v687 = vrot.slane %v659, %v686
  %v688 = vcombine.low %v666, %v673
  %v689 = vcombine.low %v680, %v687
  %v691 = vunpack.c.l.s4 1966171168
  %v692 = vunpack.c.0.s8 %v691
  %v693 = vlaneseq
  %v694 = vshrl.u32 %v693, 7
  %v695 = vsub.s32 %v692, %v694
  %v696 = vrot.slane %v688, %v695
  %v698 = vunpack.c.l.s4 1966171168
  %v699 = vunpack.c.0.s8 %v698
  %v700 = vlaneseq
  %v701 = vshrl.u32 %v700, 7
  %v702 = vsub.s32 %v699, %v701
  %v703 = vrot.slane %v689, %v702
  %v704 = vcombine.low %v696, %v703
  %v705 = vcombine.low %v286, %v300
  %v706 = vcombine.low %v308, %v310
  %v707 = vcombine.low %v293, %v307
  %v708 = vcombine.low %v309, %v311
  %v710 = vunpack.c.l.s4 1966171168
  %v711 = vunpack.c.0.s8 %v710
  %v712 = vlaneseq
  %v713 = vshrl.u32 %v712, 7
  %v714 = vsub.s32 %v711, %v713
  %v715 = vrot.slane %v705, %v714
  %v717 = vunpack.c.l.s4 1966171168
  %v718 = vunpack.c.0.s8 %v717
  %v719 = vlaneseq
  %v720 = vshrl.u32 %v719, 7
  %v721 = vsub.s32 %v718, %v720
  %v722 = vrot.slane %v706, %v721
  %v724 = vunpack.c.l.s4 1966171168
  %v725 = vunpack.c.0.s8 %v724
  %v726 = vlaneseq
  %v727 = vshrl.u32 %v726, 7
  %v728 = vsub.s32 %v725, %v727
  %v729 = vrot.slane %v707, %v728
  %v731 = vunpack.c.l.s4 1966171168
  %v732 = vunpack.c.0.s8 %v731
  %v733 = vlaneseq
  %v734 = vshrl.u32 %v733, 7
  %v735 = vsub.s32 %v732, %v734
  %v736 = vrot.slane %v708, %v735
  %v737 = vcombine.low %v715, %v722
  %v738 = vcombine.low %v729, %v736
  %v740 = vunpack.c.l.s4 1966171168
  %v741 = vunpack.c.0.s8 %v740
  %v742 = vlaneseq
  %v743 = vshrl.u32 %v742, 7
  %v744 = vsub.s32 %v741, %v743
  %v745 = vrot.slane %v737, %v744
  %v747 = vunpack.c.l.s4 1966171168
  %v748 = vunpack.c.0.s8 %v747
  %v749 = vlaneseq
  %v750 = vshrl.u32 %v749, 7
  %v751 = vsub.s32 %v748, %v750
  %v752 = vrot.slane %v738, %v751
  %v753 = vcombine.low %v745, %v752
  %v754 = vcombine.low %v326, %v333
  %v755 = vcombine.low %v334, %v358
  %v756 = vcombine.low %v372, %v380
  %v757 = vcombine.low %v382, %v365
  %v759 = vunpack.c.l.s4 1966171168
  %v760 = vunpack.c.0.s8 %v759
  %v761 = vlaneseq
  %v762 = vshrl.u32 %v761, 7
  %v763 = vsub.s32 %v760, %v762
  %v764 = vrot.slane %v754, %v763
  %v766 = vunpack.c.l.s4 1966171168
  %v767 = vunpack.c.0.s8 %v766
  %v768 = vlaneseq
  %v769 = vshrl.u32 %v768, 7
  %v770 = vsub.s32 %v767, %v769
  %v771 = vrot.slane %v755, %v770
  %v773 = vunpack.c.l.s4 1966171168
  %v774 = vunpack.c.0.s8 %v773
  %v775 = vlaneseq
  %v776 = vshrl.u32 %v775, 7
  %v777 = vsub.s32 %v774, %v776
  %v778 = vrot.slane %v756, %v777
  %v780 = vunpack.c.l.s4 1966171168
  %v781 = vunpack.c.0.s8 %v780
  %v782 = vlaneseq
  %v783 = vshrl.u32 %v782, 7
  %v784 = vsub.s32 %v781, %v783
  %v785 = vrot.slane %v757, %v784
  %v786 = vcombine.low %v764, %v771
  %v787 = vcombine.low %v778, %v785
  %v789 = vunpack.c.l.s4 1966171168
  %v790 = vunpack.c.0.s8 %v789
  %v791 = vlaneseq
  %v792 = vshrl.u32 %v791, 7
  %v793 = vsub.s32 %v790, %v792
  %v794 = vrot.slane %v786, %v793
  %v796 = vunpack.c.l.s4 1966171168
  %v797 = vunpack.c.0.s8 %v796
  %v798 = vlaneseq
  %v799 = vshrl.u32 %v798, 7
  %v800 = vsub.s32 %v797, %v799
  %v801 = vrot.slane %v787, %v800
  %v802 = vcombine.low %v794, %v801
  %v803 = vcombine.low %v379, %v381
  %v804 = vcombine.low %v383, %v407
  %v805 = vcombine.low %v421, %v429
  %v806 = vcombine.low %v431, %v414
  %v808 = vunpack.c.l.s4 1966171168
  %v809 = vunpack.c.0.s8 %v808
  %v810 = vlaneseq
  %v811 = vshrl.u32 %v810, 7
  %v812 = vsub.s32 %v809, %v811
  %v813 = vrot.slane %v803, %v812
  %v815 = vunpack.c.l.s4 1966171168
  %v816 = vunpack.c.0.s8 %v815
  %v817 = vlaneseq
  %v818 = vshrl.u32 %v817, 7
  %v819 = vsub.s32 %v816, %v818
  %v820 = vrot.slane %v804, %v819
  %v822 = vunpack.c.l.s4 1966171168
  %v823 = vunpack.c.0.s8 %v822
  %v824 = vlaneseq
  %v825 = vshrl.u32 %v824, 7
  %v826 = vsub.s32 %v823, %v825
  %v827 = vrot.slane %v805, %v826
  %v829 = vunpack.c.l.s4 1966171168
  %v830 = vunpack.c.0.s8 %v829
  %v831 = vlaneseq
  %v832 = vshrl.u32 %v831, 7
  %v833 = vsub.s32 %v830, %v832
  %v834 = vrot.slane %v806, %v833
  %v835 = vcombine.low %v813, %v820
  %v836 = vcombine.low %v827, %v834
  %v838 = vunpack.c.l.s4 1966171168
  %v839 = vunpack.c.0.s8 %v838
  %v840 = vlaneseq
  %v841 = vshrl.u32 %v840, 7
  %v842 = vsub.s32 %v839, %v841
  %v843 = vrot.slane %v835, %v842
  %v845 = vunpack.c.l.s4 1966171168
  %v846 = vunpack.c.0.s8 %v845
  %v847 = vlaneseq
  %v848 = vshrl.u32 %v847, 7
  %v849 = vsub.s32 %v846, %v848
  %v850 = vrot.slane %v836, %v849
  %v851 = vcombine.low %v843, %v850
  %v852 = vcombine.low %v428, %v430
  %v853 = vcombine.low %v432, %v456
  %v854 = vcombine.low %v470, %v478
  %v855 = vcombine.low %v480, %v463
  %v857 = vunpack.c.l.s4 1966171168
  %v858 = vunpack.c.0.s8 %v857
  %v859 = vlaneseq
  %v860 = vshrl.u32 %v859, 7
  %v861 = vsub.s32 %v858, %v860
  %v862 = vrot.slane %v852, %v861
  %v864 = vunpack.c.l.s4 1966171168
  %v865 = vunpack.c.0.s8 %v864
  %v866 = vlaneseq
  %v867 = vshrl.u32 %v866, 7
  %v868 = vsub.s32 %v865, %v867
  %v869 = vrot.slane %v853, %v868
  %v871 = vunpack.c.l.s4 1966171168
  %v872 = vunpack.c.0.s8 %v871
  %v873 = vlaneseq
  %v874 = vshrl.u32 %v873, 7
  %v875 = vsub.s32 %v872, %v874
  %v876 = vrot.slane %v854, %v875
  %v878 = vunpack.c.l.s4 1966171168
  %v879 = vunpack.c.0.s8 %v878
  %v880 = vlaneseq
  %v881 = vshrl.u32 %v880, 7
  %v882 = vsub.s32 %v879, %v881
  %v883 = vrot.slane %v855, %v882
  %v884 = vcombine.low %v862, %v869
  %v885 = vcombine.low %v876, %v883
  %v887 = vunpack.c.l.s4 1966171168
  %v888 = vunpack.c.0.s8 %v887
  %v889 = vlaneseq
  %v890 = vshrl.u32 %v889, 7
  %v891 = vsub.s32 %v888, %v890
  %v892 = vrot.slane %v884, %v891
  %v894 = vunpack.c.l.s4 1966171168
  %v895 = vunpack.c.0.s8 %v894
  %v896 = vlaneseq
  %v897 = vshrl.u32 %v896, 7
  %v898 = vsub.s32 %v895, %v897
  %v899 = vrot.slane %v885, %v898
  %v900 = vcombine.low %v892, %v899
  %v901 = vcombine.low %v477, %v479
  %v902 = vcombine.low %v481, %v505
  %v903 = vcombine.low %v519, %v527
  %v904 = vcombine.low %v529, %v512
  %v906 = vunpack.c.l.s4 1966171168
  %v907 = vunpack.c.0.s8 %v906
  %v908 = vlaneseq
  %v909 = vshrl.u32 %v908, 7
  %v910 = vsub.s32 %v907, %v909
  %v911 = vrot.slane %v901, %v910
  %v913 = vunpack.c.l.s4 1966171168
  %v914 = vunpack.c.0.s8 %v913
  %v915 = vlaneseq
  %v916 = vshrl.u32 %v915, 7
  %v917 = vsub.s32 %v914, %v916
  %v918 = vrot.slane %v902, %v917
  %v920 = vunpack.c.l.s4 1966171168
  %v921 = vunpack.c.0.s8 %v920
  %v922 = vlaneseq
  %v923 = vshrl.u32 %v922, 7
  %v924 = vsub.s32 %v921, %v923
  %v925 = vrot.slane %v903, %v924
  %v927 = vunpack.c.l.s4 1966171168
  %v928 = vunpack.c.0.s8 %v927
  %v929 = vlaneseq
  %v930 = vshrl.u32 %v929, 7
  %v931 = vsub.s32 %v928, %v930
  %v932 = vrot.slane %v904, %v931
  %v933 = vcombine.low %v911, %v918
  %v934 = vcombine.low %v925, %v932
  %v936 = vunpack.c.l.s4 1966171168
  %v937 = vunpack.c.0.s8 %v936
  %v938 = vlaneseq
  %v939 = vshrl.u32 %v938, 7
  %v940 = vsub.s32 %v937, %v939
  %v941 = vrot.slane %v933, %v940
  %v943 = vunpack.c.l.s4 1966171168
  %v944 = vunpack.c.0.s8 %v943
  %v945 = vlaneseq
  %v946 = vshrl.u32 %v945, 7
  %v947 = vsub.s32 %v944, %v946
  %v948 = vrot.slane %v934, %v947
  %v949 = vcombine.low %v941, %v948
  %v950 = vcombine.low %v526, %v528
  %v951 = vcombine.low %v530, %v545
  %v952 = vcombine.low %v552, %v553
  %v954 = vunpack.c.l.s4 1966171168
  %v955 = vunpack.c.0.s8 %v954
  %v956 = vlaneseq
  %v957 = vshrl.u32 %v956, 7
  %v958 = vsub.s32 %v955, %v957
  %v959 = vrot.slane %v950, %v958
  %v961 = vunpack.c.l.s4 1966171168
  %v962 = vunpack.c.0.s8 %v961
  %v963 = vlaneseq
  %v964 = vshrl.u32 %v963, 7
  %v965 = vsub.s32 %v962, %v964
  %v966 = vrot.slane %v951, %v965
  %v968 = vunpack.c.l.s4 1966171168
  %v969 = vunpack.c.0.s8 %v968
  %v970 = vlaneseq
  %v971 = vshrl.u32 %v970, 7
  %v972 = vsub.s32 %v969, %v971
  %v973 = vrot.slane %v952, %v972
  %v974 = vcombine.low %v959, %v966
  %v976 = vunpack.c.l.s4 1966171168
  %v977 = vunpack.c.0.s8 %v976
  %v978 = vlaneseq
  %v979 = vshrl.u32 %v978, 7
  %v980 = vsub.s32 %v977, %v979
  %v981 = vrot.slane %v974, %v980
  %v983 = vunpack.c.l.s4 1966171168
  %v984 = vunpack.c.0.s8 %v983
  %v985 = vlaneseq
  %v986 = vshrl.u32 %v985, 7
  %v987 = vsub.s32 %v984, %v986
  %v988 = vrot.slane %v973, %v987
  %v989 = vcombine.low %v981, %v988
  %vm990 = vcmask 64512
  %v991 = vsel %vm990, %v606, 0
  %v993 = vsel %vm990, %v655, 0
  %v995 = vsel %vm990, %v704, 0
  %v997 = vsel %vm990, %v753, 0
  %v999 = vsel %vm990, %v802, 0
  %v1001 = vsel %vm990, %v851, 0
  %v1003 = vsel %vm990, %v900, 0
  %v1005 = vsel %vm990, %v949, 0
  %v1007 = vsel %vm990, %v989, 0
  %1009 = vmatprep.subr.mxu0 0.0
  %1010 = vmatpush1.msra.mxu0 0.0
  %1011 = vmatprep.subr.mxu0 0.0
  %1012 = vmatpush1.msra.mxu0 0.0
  %1013 = vmatprep.subr.mxu0 0.0
  %1014 = vmatpush1.msra.mxu0 0.0
  %1015 = vmatprep.subr.mxu0 0.0
  %1016 = vmatpush1.msra.mxu0 0.0
  %1017 = vmatprep.subr.mxu0 0.0
  %1018 = vmatpush1.msra.mxu0 0.0
  %1019 = vmatprep.subr.mxu0 0.0
  %1020 = vmatpush1.msra.mxu0 0.0
  %1021 = vmatprep.subr.mxu0 0.0
  %1022 = vmatpush1.msra.mxu0 0.0
  %1023 = vmatprep.subr.mxu0 0.0
  %1024 = vmatpush1.msra.mxu0 0.0
  %1025 = vmatprep.subr.mxu0 0.0
  %1026 = vmatpush1.msra.mxu0 0.0
  %1027 = vmatprep.subr.mxu0 0.0
  %1028 = vmatpush1.msra.mxu0 0.0
  %1029 = vmatprep.subr.mxu0 0.0
  %1030 = vmatpush1.msra.mxu0 0.0
  %1031 = vmatprep.subr.mxu0 0.0
  %1032 = vmatpush1.msra.mxu0 0.0
  %1033 = vmatprep.subr.mxu0 0.0
  %1034 = vmatpush1.msra.mxu0 0.0
  %1035 = vmatprep.subr.mxu0 0.0
  %1036 = vmatpush1.msra.mxu0 0.0
  %1037 = vmatprep.subr.mxu0 0.0
  %1038 = vmatpush1.msra.mxu0 0.0
  %1039 = vmatprep.subr.mxu0 0.0
  %1040 = vmatpush1.msra.mxu0 %v28
  %1041 = vmatprep.subr.mxu0 0.0
  %1042 = vmatpush2.msra.mxu0 0.0
  %1043 = vmatprep.subr.mxu0 0.0
  %1044 = vmatpush2.msra.mxu0 0.0
  %1045 = vmatprep.subr.mxu0 0.0
  %1046 = vmatpush2.msra.mxu0 0.0
  %1047 = vmatprep.subr.mxu0 0.0
  %1048 = vmatpush2.msra.mxu0 0.0
  %1049 = vmatprep.subr.mxu0 0.0
  %1050 = vmatpush2.msra.mxu0 0.0
  %1051 = vmatprep.subr.mxu0 0.0
  %1052 = vmatpush2.msra.mxu0 0.0
  %1053 = vmatprep.subr.mxu0 0.0
  %1054 = vmatpush2.msra.mxu0 0.0
  %1055 = vmatprep.subr.mxu0 0.0
  %1056 = vmatpush2.msra.mxu0 0.0
  %1057 = vmatprep.subr.mxu0 0.0
  %1058 = vmatpush2.msra.mxu0 0.0
  %1059 = vmatprep.subr.mxu0 0.0
  %1060 = vmatpush2.msra.mxu0 0.0
  %1061 = vmatprep.subr.mxu0 0.0
  %1062 = vmatpush2.msra.mxu0 0.0
  %1063 = vmatprep.subr.mxu0 0.0
  %1064 = vmatpush2.msra.mxu0 0.0
  %1065 = vmatprep.subr.mxu0 0.0
  %1066 = vmatpush2.msra.mxu0 0.0
  %1067 = vmatprep.subr.mxu0 0.0
  %1068 = vmatpush2.msra.mxu0 0.0
  %1069 = vmatprep.subr.mxu0 0.0
  %1070 = vmatpush2.msra.mxu0 0.0
  %1071 = vmatprep.subr.mxu0 0.0
  %1072 = vmatpush2.msra.mxu0 0.0
  %1073 = vmatprep.mubr.f32.mxu0 0.0
  %1074 = vmatmul.mubr.f32.gmra.mxu0 %v991
  %v1075 = vpop.f32.mrf.mxu0
  %v1076 = vadd.f32 %v557, %v1075
  %v1077 = vpop.f32.mrf.mxu0
  %1078 = vmatprep.mubr.f32.mxu0 0.0
  %1079 = vmatmul.mubr.f32.gmra.mxu0 %v993
  %v1080 = vpop.f32.mrf.mxu0
  %v1081 = vadd.f32 %v557, %v1080
  %v1082 = vpop.f32.mrf.mxu0
  %1083 = vmatprep.mubr.f32.mxu0 0.0
  %1084 = vmatmul.mubr.f32.gmra.mxu0 %v995
  %v1085 = vpop.f32.mrf.mxu0
  %v1086 = vadd.f32 %v557, %v1085
  %v1087 = vpop.f32.mrf.mxu0
  %1088 = vmatprep.mubr.f32.mxu0 0.0
  %1089 = vmatmul.mubr.f32.gmra.mxu0 %v997
  %v1090 = vpop.f32.mrf.mxu0
  %v1091 = vadd.f32 %v557, %v1090
  %v1092 = vpop.f32.mrf.mxu0
  %1093 = vmatprep.mubr.f32.mxu0 0.0
  %1094 = vmatmul.mubr.f32.gmra.mxu0 %v999
  %v1095 = vpop.f32.mrf.mxu0
  %v1096 = vadd.f32 %v557, %v1095
  %v1097 = vpop.f32.mrf.mxu0
  %1098 = vmatprep.mubr.f32.mxu0 0.0
  %1099 = vmatmul.mubr.f32.gmra.mxu0 %v1001
  %v1100 = vpop.f32.mrf.mxu0
  %v1101 = vadd.f32 %v557, %v1100
  %v1102 = vpop.f32.mrf.mxu0
  %1103 = vmatprep.mubr.f32.mxu0 0.0
  %1104 = vmatmul.mubr.f32.gmra.mxu0 %v1003
  %v1105 = vpop.f32.mrf.mxu0
  %v1106 = vadd.f32 %v557, %v1105
  %v1107 = vpop.f32.mrf.mxu0
  %1108 = vmatprep.mubr.f32.mxu0 0.0
  %1109 = vmatmul.mubr.f32.gmra.mxu0 %v1005
  %v1110 = vpop.f32.mrf.mxu0
  %v1111 = vadd.f32 %v557, %v1110
  %v1112 = vpop.f32.mrf.mxu0
  %1113 = vmatprep.mubr.f32.mxu0 0.0
  %1114 = vmatmul.mubr.f32.gmra.mxu0 %v1007
  %v1115 = vpop.f32.mrf.mxu0
  %v1116 = vadd.f32 %v557, %v1115
  %v1117 = vpop.f32.mrf.mxu0
  %1118 = vdwg.mxu0
  %v1119 = vmul.f32 %v1076, 0.2
  %v1120 = vmul.f32 %v1081, 0.2
  %v1121 = vmul.f32 %v1086, 0.2
  %v1122 = vmul.f32 %v1091, 0.2
  %v1123 = vmul.f32 %v1096, 0.2
  %v1124 = vmul.f32 %v1101, 0.2
  %v1125 = vmul.f32 %v1106, 0.2
  %v1126 = vmul.f32 %v1111, 0.2
  %v1127 = vmul.f32 %v1116, 0.2
  %v1128 = vmax.f32 %v1076, %v1119
  %v1129 = vmax.f32 %v1081, %v1120
  %v1130 = vmax.f32 %v1086, %v1121
  %v1131 = vmax.f32 %v1091, %v1122
  %v1132 = vmax.f32 %v1096, %v1123
  %v1133 = vmax.f32 %v1101, %v1124
  %v1134 = vmax.f32 %v1106, %v1125
  %v1135 = vmax.f32 %v1111, %v1126
  %v1136 = vmax.f32 %v1116, %v1127
  %vm1137 = vcmask 523264
  %v1138 = vsel %vm1137, %v1128, 0.0
  %v1139 = vsel %vm1137, %v1129, 0.0
  %v1140 = vadd.f32 %v1138, %v1139
  %v1141 = vsel %vm1137, %v1130, 0.0
  %v1142 = vadd.f32 %v1140, %v1141
  %v1143 = vsel %vm1137, %v1131, 0.0
  %v1144 = vadd.f32 %v1142, %v1143
  %v1145 = vsel %vm1137, %v1132, 0.0
  %v1146 = vadd.f32 %v1144, %v1145
  %v1147 = vsel %vm1137, %v1133, 0.0
  %v1148 = vadd.f32 %v1146, %v1147
  %v1149 = vsel %vm1137, %v1134, 0.0
  %v1150 = vadd.f32 %v1148, %v1149
  %v1151 = vsel %vm1137, %v1135, 0.0
  %v1152 = vadd.f32 %v1150, %v1151
  %vm1153 = vcmask 521216
  %v1154 = vsel %vm1153, %v1136, 0.0
  %v1155 = vadd.f32 %v1152, %v1154
  %v1156 = vrot.slane %v1155, 4
  %v1157 = vadd.f32 %v1155, %v1156
  %v1158 = vrot.slane %v1157, 2
  %v1159 = vadd.f32 %v1157, %v1158
  %v1160 = vrot.slane %v1159, 1
  %v1161 = vadd.f32 %v1159, %v1160
  %v1162 = vmul.f32 %v1161, 0.014285714
  %v1163 = vmul.f32 %v1128, %v1128
  %v1164 = vmul.f32 %v1129, %v1129
  %v1165 = vmul.f32 %v1130, %v1130
  %v1166 = vmul.f32 %v1131, %v1131
  %v1167 = vmul.f32 %v1132, %v1132
  %v1168 = vmul.f32 %v1133, %v1133
  %v1169 = vmul.f32 %v1134, %v1134
  %v1170 = vmul.f32 %v1135, %v1135
  %v1171 = vmul.f32 %v1136, %v1136
  %v1172 = vsel %vm1137, %v1163, 0.0
  %v1173 = vsel %vm1137, %v1164, 0.0
  %v1174 = vadd.f32 %v1172, %v1173
  %v1175 = vsel %vm1137, %v1165, 0.0
  %v1176 = vadd.f32 %v1174, %v1175
  %v1177 = vsel %vm1137, %v1166, 0.0
  %v1178 = vadd.f32 %v1176, %v1177
  %v1179 = vsel %vm1137, %v1167, 0.0
  %v1180 = vadd.f32 %v1178, %v1179
  %v1181 = vsel %vm1137, %v1168, 0.0
  %v1182 = vadd.f32 %v1180, %v1181
  %v1183 = vsel %vm1137, %v1169, 0.0
  %v1184 = vadd.f32 %v1182, %v1183
  %v1185 = vsel %vm1137, %v1170, 0.0
  %v1186 = vadd.f32 %v1184, %v1185
  %v1187 = vsel %vm1153, %v1171, 0.0
  %v1188 = vadd.f32 %v1186, %v1187
  %v1189 = vrot.slane %v1188, 4
  %v1190 = vadd.f32 %v1188, %v1189
  %v1191 = vrot.slane %v1190, 2
  %v1192 = vadd.f32 %v1190, %v1191
  %v1193 = vrot.slane %v1192, 1
  %v1194 = vadd.f32 %v1192, %v1193
  %v1195 = vmul.f32 %v1194, 0.014285714
  %v1196 = vmul.f32 %v1162, %v1162
  %v1197 = vsub.f32 %v1195, %v1196
  %v1198 = vadd.f32 %v1197, 1e-05
  %v1199 = vrsqrt.pop %v1198
  %v1200 = vmul.f32 %v35, %v1199
  %v1201 = vlaneseq
  %v1202 = vshrl.u32 %v1201, 7
  %v1203 = vsub.s32 1, %v1202
  %v1204 = vrot.slane %v1200, %v1203
  %v1205 = vmul.f32 %v1128, %v1204
  %v1206 = vmul.f32 %v1129, %v1204
  %v1207 = vmul.f32 %v1130, %v1204
  %v1208 = vmul.f32 %v1131, %v1204
  %v1209 = vmul.f32 %v1132, %v1204
  %v1210 = vmul.f32 %v1133, %v1204
  %v1211 = vmul.f32 %v1134, %v1204
  %v1212 = vmul.f32 %v1135, %v1204
  %v1213 = vmul.f32 %v1136, %v1204
  %v1214 = vmul.f32 %v1162, %v1200
  %v1216 = vrot.slane %v1214, 7
  %v1218 = vsub.f32 %v35, %v1216
  %v1219 = vlaneseq
  %v1220 = vshrl.u32 %v1219, 7
  %v1221 = vsub.s32 2, %v1220
  %v1222 = vrot.slane %v1218, %v1221
  %v1223 = vadd.f32 %v1205, %v1222
  %v1224 = vadd.f32 %v1206, %v1222
  %v1225 = vadd.f32 %v1207, %v1222
  %v1226 = vadd.f32 %v1208, %v1222
  %v1227 = vadd.f32 %v1209, %v1222
  %v1228 = vadd.f32 %v1210, %v1222
  %v1229 = vadd.f32 %v1211, %v1222
  %v1230 = vadd.f32 %v1212, %v1222
  %v1231 = vadd.f32 %v1213, %v1222
  %v1241 = vcombine.high %v1223, %v1223
  %v1243 = vunpack.c.l.s4 1966171168
  %v1244 = vunpack.c.0.s8 %v1243
  %v1245 = vlaneseq
  %v1246 = vshrl.u32 %v1245, 7
  %v1247 = vsub.s32 %v1244, %v1246
  %v1248 = vrot.slane %v1223, %v1247
  %v1250 = vunpack.c.l.s4 1966171168
  %v1251 = vunpack.c.0.s8 %v1250
  %v1252 = vlaneseq
  %v1253 = vshrl.u32 %v1252, 7
  %v1254 = vsub.s32 %v1251, %v1253
  %v1255 = vrot.slane %v1241, %v1254
  %v1256 = vcombine.high %v1248, %v1248
  %v1257 = vcombine.high %v1255, %v1255
  %v1259 = vunpack.c.l.s4 1966171168
  %v1260 = vunpack.c.0.s8 %v1259
  %v1261 = vlaneseq
  %v1262 = vshrl.u32 %v1261, 7
  %v1263 = vsub.s32 %v1260, %v1262
  %v1264 = vrot.slane %v1248, %v1263
  %v1266 = vunpack.c.l.s4 1966171168
  %v1267 = vunpack.c.0.s8 %v1266
  %v1268 = vlaneseq
  %v1269 = vshrl.u32 %v1268, 7
  %v1270 = vsub.s32 %v1267, %v1269
  %v1271 = vrot.slane %v1255, %v1270
  %v1273 = vunpack.c.l.s4 1966171168
  %v1274 = vunpack.c.0.s8 %v1273
  %v1275 = vlaneseq
  %v1276 = vshrl.u32 %v1275, 7
  %v1277 = vsub.s32 %v1274, %v1276
  %v1278 = vrot.slane %v1256, %v1277
  %v1280 = vunpack.c.l.s4 1966171168
  %v1281 = vunpack.c.0.s8 %v1280
  %v1282 = vlaneseq
  %v1283 = vshrl.u32 %v1282, 7
  %v1284 = vsub.s32 %v1281, %v1283
  %v1285 = vrot.slane %v1257, %v1284
  %v1286 = vcombine.high %v1264, %v1264
  %v1287 = vcombine.high %v1271, %v1271
  %v1288 = vcombine.high %v1278, %v1278
  %v1289 = vcombine.high %v1285, %v1285
  %v1290 = vcombine.high %v1224, %v1224
  %v1292 = vunpack.c.l.s4 1966171168
  %v1293 = vunpack.c.0.s8 %v1292
  %v1294 = vlaneseq
  %v1295 = vshrl.u32 %v1294, 7
  %v1296 = vsub.s32 %v1293, %v1295
  %v1297 = vrot.slane %v1224, %v1296
  %v1299 = vunpack.c.l.s4 1966171168
  %v1300 = vunpack.c.0.s8 %v1299
  %v1301 = vlaneseq
  %v1302 = vshrl.u32 %v1301, 7
  %v1303 = vsub.s32 %v1300, %v1302
  %v1304 = vrot.slane %v1290, %v1303
  %v1305 = vcombine.high %v1297, %v1297
  %v1306 = vcombine.high %v1304, %v1304
  %v1308 = vunpack.c.l.s4 1966171168
  %v1309 = vunpack.c.0.s8 %v1308
  %v1310 = vlaneseq
  %v1311 = vshrl.u32 %v1310, 7
  %v1312 = vsub.s32 %v1309, %v1311
  %v1313 = vrot.slane %v1297, %v1312
  %v1315 = vunpack.c.l.s4 1966171168
  %v1316 = vunpack.c.0.s8 %v1315
  %v1317 = vlaneseq
  %v1318 = vshrl.u32 %v1317, 7
  %v1319 = vsub.s32 %v1316, %v1318
  %v1320 = vrot.slane %v1304, %v1319
  %v1322 = vunpack.c.l.s4 1966171168
  %v1323 = vunpack.c.0.s8 %v1322
  %v1324 = vlaneseq
  %v1325 = vshrl.u32 %v1324, 7
  %v1326 = vsub.s32 %v1323, %v1325
  %v1327 = vrot.slane %v1305, %v1326
  %v1329 = vunpack.c.l.s4 1966171168
  %v1330 = vunpack.c.0.s8 %v1329
  %v1331 = vlaneseq
  %v1332 = vshrl.u32 %v1331, 7
  %v1333 = vsub.s32 %v1330, %v1332
  %v1334 = vrot.slane %v1306, %v1333
  %v1335 = vcombine.high %v1313, %v1313
  %v1336 = vcombine.high %v1320, %v1320
  %v1337 = vcombine.high %v1327, %v1327
  %v1338 = vcombine.high %v1334, %v1334
  %v1339 = vcombine.high %v1225, %v1225
  %v1341 = vunpack.c.l.s4 1966171168
  %v1342 = vunpack.c.0.s8 %v1341
  %v1343 = vlaneseq
  %v1344 = vshrl.u32 %v1343, 7
  %v1345 = vsub.s32 %v1342, %v1344
  %v1346 = vrot.slane %v1225, %v1345
  %v1348 = vunpack.c.l.s4 1966171168
  %v1349 = vunpack.c.0.s8 %v1348
  %v1350 = vlaneseq
  %v1351 = vshrl.u32 %v1350, 7
  %v1352 = vsub.s32 %v1349, %v1351
  %v1353 = vrot.slane %v1339, %v1352
  %v1354 = vcombine.high %v1346, %v1346
  %v1355 = vcombine.high %v1353, %v1353
  %v1357 = vunpack.c.l.s4 1966171168
  %v1358 = vunpack.c.0.s8 %v1357
  %v1359 = vlaneseq
  %v1360 = vshrl.u32 %v1359, 7
  %v1361 = vsub.s32 %v1358, %v1360
  %v1362 = vrot.slane %v1346, %v1361
  %v1364 = vunpack.c.l.s4 1966171168
  %v1365 = vunpack.c.0.s8 %v1364
  %v1366 = vlaneseq
  %v1367 = vshrl.u32 %v1366, 7
  %v1368 = vsub.s32 %v1365, %v1367
  %v1369 = vrot.slane %v1353, %v1368
  %v1371 = vunpack.c.l.s4 1966171168
  %v1372 = vunpack.c.0.s8 %v1371
  %v1373 = vlaneseq
  %v1374 = vshrl.u32 %v1373, 7
  %v1375 = vsub.s32 %v1372, %v1374
  %v1376 = vrot.slane %v1354, %v1375
  %v1378 = vunpack.c.l.s4 1966171168
  %v1379 = vunpack.c.0.s8 %v1378
  %v1380 = vlaneseq
  %v1381 = vshrl.u32 %v1380, 7
  %v1382 = vsub.s32 %v1379, %v1381
  %v1383 = vrot.slane %v1355, %v1382
  %v1384 = vcombine.high %v1362, %v1362
  %v1385 = vcombine.high %v1369, %v1369
  %v1386 = vcombine.high %v1376, %v1376
  %v1387 = vcombine.high %v1383, %v1383
  %v1388 = vcombine.high %v1226, %v1226
  %v1390 = vunpack.c.l.s4 1966171168
  %v1391 = vunpack.c.0.s8 %v1390
  %v1392 = vlaneseq
  %v1393 = vshrl.u32 %v1392, 7
  %v1394 = vsub.s32 %v1391, %v1393
  %v1395 = vrot.slane %v1226, %v1394
  %v1397 = vunpack.c.l.s4 1966171168
  %v1398 = vunpack.c.0.s8 %v1397
  %v1399 = vlaneseq
  %v1400 = vshrl.u32 %v1399, 7
  %v1401 = vsub.s32 %v1398, %v1400
  %v1402 = vrot.slane %v1388, %v1401
  %v1403 = vcombine.high %v1395, %v1395
  %v1404 = vcombine.high %v1402, %v1402
  %v1406 = vunpack.c.l.s4 1966171168
  %v1407 = vunpack.c.0.s8 %v1406
  %v1408 = vlaneseq
  %v1409 = vshrl.u32 %v1408, 7
  %v1410 = vsub.s32 %v1407, %v1409
  %v1411 = vrot.slane %v1395, %v1410
  %v1413 = vunpack.c.l.s4 1966171168
  %v1414 = vunpack.c.0.s8 %v1413
  %v1415 = vlaneseq
  %v1416 = vshrl.u32 %v1415, 7
  %v1417 = vsub.s32 %v1414, %v1416
  %v1418 = vrot.slane %v1402, %v1417
  %v1420 = vunpack.c.l.s4 1966171168
  %v1421 = vunpack.c.0.s8 %v1420
  %v1422 = vlaneseq
  %v1423 = vshrl.u32 %v1422, 7
  %v1424 = vsub.s32 %v1421, %v1423
  %v1425 = vrot.slane %v1403, %v1424
  %v1427 = vunpack.c.l.s4 1966171168
  %v1428 = vunpack.c.0.s8 %v1427
  %v1429 = vlaneseq
  %v1430 = vshrl.u32 %v1429, 7
  %v1431 = vsub.s32 %v1428, %v1430
  %v1432 = vrot.slane %v1404, %v1431
  %v1433 = vcombine.high %v1411, %v1411
  %v1434 = vcombine.high %v1418, %v1418
  %v1435 = vcombine.high %v1425, %v1425
  %v1436 = vcombine.high %v1432, %v1432
  %v1437 = vcombine.high %v1227, %v1227
  %v1439 = vunpack.c.l.s4 1966171168
  %v1440 = vunpack.c.0.s8 %v1439
  %v1441 = vlaneseq
  %v1442 = vshrl.u32 %v1441, 7
  %v1443 = vsub.s32 %v1440, %v1442
  %v1444 = vrot.slane %v1227, %v1443
  %v1446 = vunpack.c.l.s4 1966171168
  %v1447 = vunpack.c.0.s8 %v1446
  %v1448 = vlaneseq
  %v1449 = vshrl.u32 %v1448, 7
  %v1450 = vsub.s32 %v1447, %v1449
  %v1451 = vrot.slane %v1437, %v1450
  %v1452 = vcombine.high %v1444, %v1444
  %v1453 = vcombine.high %v1451, %v1451
  %v1455 = vunpack.c.l.s4 1966171168
  %v1456 = vunpack.c.0.s8 %v1455
  %v1457 = vlaneseq
  %v1458 = vshrl.u32 %v1457, 7
  %v1459 = vsub.s32 %v1456, %v1458
  %v1460 = vrot.slane %v1444, %v1459
  %v1462 = vunpack.c.l.s4 1966171168
  %v1463 = vunpack.c.0.s8 %v1462
  %v1464 = vlaneseq
  %v1465 = vshrl.u32 %v1464, 7
  %v1466 = vsub.s32 %v1463, %v1465
  %v1467 = vrot.slane %v1451, %v1466
  %v1469 = vunpack.c.l.s4 1966171168
  %v1470 = vunpack.c.0.s8 %v1469
  %v1471 = vlaneseq
  %v1472 = vshrl.u32 %v1471, 7
  %v1473 = vsub.s32 %v1470, %v1472
  %v1474 = vrot.slane %v1452, %v1473
  %v1476 = vunpack.c.l.s4 1966171168
  %v1477 = vunpack.c.0.s8 %v1476
  %v1478 = vlaneseq
  %v1479 = vshrl.u32 %v1478, 7
  %v1480 = vsub.s32 %v1477, %v1479
  %v1481 = vrot.slane %v1453, %v1480
  %v1482 = vcombine.high %v1460, %v1460
  %v1483 = vcombine.high %v1467, %v1467
  %v1484 = vcombine.high %v1474, %v1474
  %v1485 = vcombine.high %v1481, %v1481
  %v1486 = vcombine.high %v1228, %v1228
  %v1488 = vunpack.c.l.s4 1966171168
  %v1489 = vunpack.c.0.s8 %v1488
  %v1490 = vlaneseq
  %v1491 = vshrl.u32 %v1490, 7
  %v1492 = vsub.s32 %v1489, %v1491
  %v1493 = vrot.slane %v1228, %v1492
  %v1495 = vunpack.c.l.s4 1966171168
  %v1496 = vunpack.c.0.s8 %v1495
  %v1497 = vlaneseq
  %v1498 = vshrl.u32 %v1497, 7
  %v1499 = vsub.s32 %v1496, %v1498
  %v1500 = vrot.slane %v1486, %v1499
  %v1501 = vcombine.high %v1493, %v1493
  %v1502 = vcombine.high %v1500, %v1500
  %v1504 = vunpack.c.l.s4 1966171168
  %v1505 = vunpack.c.0.s8 %v1504
  %v1506 = vlaneseq
  %v1507 = vshrl.u32 %v1506, 7
  %v1508 = vsub.s32 %v1505, %v1507
  %v1509 = vrot.slane %v1493, %v1508
  %v1511 = vunpack.c.l.s4 1966171168
  %v1512 = vunpack.c.0.s8 %v1511
  %v1513 = vlaneseq
  %v1514 = vshrl.u32 %v1513, 7
  %v1515 = vsub.s32 %v1512, %v1514
  %v1516 = vrot.slane %v1500, %v1515
  %v1518 = vunpack.c.l.s4 1966171168
  %v1519 = vunpack.c.0.s8 %v1518
  %v1520 = vlaneseq
  %v1521 = vshrl.u32 %v1520, 7
  %v1522 = vsub.s32 %v1519, %v1521
  %v1523 = vrot.slane %v1501, %v1522
  %v1525 = vunpack.c.l.s4 1966171168
  %v1526 = vunpack.c.0.s8 %v1525
  %v1527 = vlaneseq
  %v1528 = vshrl.u32 %v1527, 7
  %v1529 = vsub.s32 %v1526, %v1528
  %v1530 = vrot.slane %v1502, %v1529
  %v1531 = vcombine.high %v1509, %v1509
  %v1532 = vcombine.high %v1516, %v1516
  %v1533 = vcombine.high %v1523, %v1523
  %v1534 = vcombine.high %v1530, %v1530
  %v1535 = vcombine.high %v1229, %v1229
  %v1537 = vunpack.c.l.s4 1966171168
  %v1538 = vunpack.c.0.s8 %v1537
  %v1539 = vlaneseq
  %v1540 = vshrl.u32 %v1539, 7
  %v1541 = vsub.s32 %v1538, %v1540
  %v1542 = vrot.slane %v1229, %v1541
  %v1544 = vunpack.c.l.s4 1966171168
  %v1545 = vunpack.c.0.s8 %v1544
  %v1546 = vlaneseq
  %v1547 = vshrl.u32 %v1546, 7
  %v1548 = vsub.s32 %v1545, %v1547
  %v1549 = vrot.slane %v1535, %v1548
  %v1550 = vcombine.high %v1542, %v1542
  %v1551 = vcombine.high %v1549, %v1549
  %v1553 = vunpack.c.l.s4 1966171168
  %v1554 = vunpack.c.0.s8 %v1553
  %v1555 = vlaneseq
  %v1556 = vshrl.u32 %v1555, 7
  %v1557 = vsub.s32 %v1554, %v1556
  %v1558 = vrot.slane %v1542, %v1557
  %v1560 = vunpack.c.l.s4 1966171168
  %v1561 = vunpack.c.0.s8 %v1560
  %v1562 = vlaneseq
  %v1563 = vshrl.u32 %v1562, 7
  %v1564 = vsub.s32 %v1561, %v1563
  %v1565 = vrot.slane %v1549, %v1564
  %v1567 = vunpack.c.l.s4 1966171168
  %v1568 = vunpack.c.0.s8 %v1567
  %v1569 = vlaneseq
  %v1570 = vshrl.u32 %v1569, 7
  %v1571 = vsub.s32 %v1568, %v1570
  %v1572 = vrot.slane %v1550, %v1571
  %v1574 = vunpack.c.l.s4 1966171168
  %v1575 = vunpack.c.0.s8 %v1574
  %v1576 = vlaneseq
  %v1577 = vshrl.u32 %v1576, 7
  %v1578 = vsub.s32 %v1575, %v1577
  %v1579 = vrot.slane %v1551, %v1578
  %v1580 = vcombine.high %v1558, %v1558
  %v1581 = vcombine.high %v1565, %v1565
  %v1582 = vcombine.high %v1572, %v1572
  %v1583 = vcombine.high %v1579, %v1579
  %v1584 = vcombine.high %v1230, %v1230
  %v1586 = vunpack.c.l.s4 1966171168
  %v1587 = vunpack.c.0.s8 %v1586
  %v1588 = vlaneseq
  %v1589 = vshrl.u32 %v1588, 7
  %v1590 = vsub.s32 %v1587, %v1589
  %v1591 = vrot.slane %v1230, %v1590
  %v1593 = vunpack.c.l.s4 1966171168
  %v1594 = vunpack.c.0.s8 %v1593
  %v1595 = vlaneseq
  %v1596 = vshrl.u32 %v1595, 7
  %v1597 = vsub.s32 %v1594, %v1596
  %v1598 = vrot.slane %v1584, %v1597
  %v1599 = vcombine.high %v1591, %v1591
  %v1600 = vcombine.high %v1598, %v1598
  %v1602 = vunpack.c.l.s4 1966171168
  %v1603 = vunpack.c.0.s8 %v1602
  %v1604 = vlaneseq
  %v1605 = vshrl.u32 %v1604, 7
  %v1606 = vsub.s32 %v1603, %v1605
  %v1607 = vrot.slane %v1591, %v1606
  %v1609 = vunpack.c.l.s4 1966171168
  %v1610 = vunpack.c.0.s8 %v1609
  %v1611 = vlaneseq
  %v1612 = vshrl.u32 %v1611, 7
  %v1613 = vsub.s32 %v1610, %v1612
  %v1614 = vrot.slane %v1598, %v1613
  %v1616 = vunpack.c.l.s4 1966171168
  %v1617 = vunpack.c.0.s8 %v1616
  %v1618 = vlaneseq
  %v1619 = vshrl.u32 %v1618, 7
  %v1620 = vsub.s32 %v1617, %v1619
  %v1621 = vrot.slane %v1599, %v1620
  %v1623 = vunpack.c.l.s4 1966171168
  %v1624 = vunpack.c.0.s8 %v1623
  %v1625 = vlaneseq
  %v1626 = vshrl.u32 %v1625, 7
  %v1627 = vsub.s32 %v1624, %v1626
  %v1628 = vrot.slane %v1600, %v1627
  %v1629 = vcombine.high %v1607, %v1607
  %v1630 = vcombine.high %v1614, %v1614
  %v1631 = vcombine.high %v1621, %v1621
  %v1632 = vcombine.high %v1628, %v1628
  %v1633 = vcombine.high %v1231, %v1231
  %v1635 = vunpack.c.l.s4 1966171168
  %v1636 = vunpack.c.0.s8 %v1635
  %v1637 = vlaneseq
  %v1638 = vshrl.u32 %v1637, 7
  %v1639 = vsub.s32 %v1636, %v1638
  %v1640 = vrot.slane %v1231, %v1639
  %v1642 = vunpack.c.l.s4 1966171168
  %v1643 = vunpack.c.0.s8 %v1642
  %v1644 = vlaneseq
  %v1645 = vshrl.u32 %v1644, 7
  %v1646 = vsub.s32 %v1643, %v1645
  %v1647 = vrot.slane %v1633, %v1646
  %v1648 = vcombine.high %v1640, %v1640
  %v1649 = vcombine.high %v1647, %v1647
  %v1651 = vunpack.c.l.s4 1966171168
  %v1652 = vunpack.c.0.s8 %v1651
  %v1653 = vlaneseq
  %v1654 = vshrl.u32 %v1653, 7
  %v1655 = vsub.s32 %v1652, %v1654
  %v1656 = vrot.slane %v1640, %v1655
  %v1658 = vunpack.c.l.s4 1966171168
  %v1659 = vunpack.c.0.s8 %v1658
  %v1660 = vlaneseq
  %v1661 = vshrl.u32 %v1660, 7
  %v1662 = vsub.s32 %v1659, %v1661
  %v1663 = vrot.slane %v1647, %v1662
  %v1665 = vunpack.c.l.s4 1966171168
  %v1666 = vunpack.c.0.s8 %v1665
  %v1667 = vlaneseq
  %v1668 = vshrl.u32 %v1667, 7
  %v1669 = vsub.s32 %v1666, %v1668
  %v1670 = vrot.slane %v1648, %v1669
  %v1672 = vunpack.c.l.s4 1966171168
  %v1673 = vunpack.c.0.s8 %v1672
  %v1674 = vlaneseq
  %v1675 = vshrl.u32 %v1674, 7
  %v1676 = vsub.s32 %v1673, %v1675
  %v1677 = vrot.slane %v1649, %v1676
  %v1678 = vcombine.high %v1656, %v1656
  %v1679 = vcombine.high %v1670, %v1670
  %v1750 = vmax.f32 %v1264, %v1278
  %v1751 = vmax.f32 %v1286, %v1288
  %v1752 = vmax.f32 %v1271, %v1285
  %v1753 = vmax.f32 %v1287, %v1289
  %v1754 = vmax.f32 %v1313, %v1327
  %v1755 = vmax.f32 %v1335, %v1337
  %v1756 = vmax.f32 %v1320, %v1334
  %v1757 = vmax.f32 %v1336, %v1338
  %v1758 = vmax.f32 %v1362, %v1376
  %v1759 = vmax.f32 %v1384, %v1386
  %v1760 = vmax.f32 %v1369, %v1383
  %v1761 = vmax.f32 %v1385, %v1387
  %v1762 = vmax.f32 %v1411, %v1425
  %v1763 = vmax.f32 %v1433, %v1435
  %v1764 = vmax.f32 %v1418, %v1432
  %v1765 = vmax.f32 %v1434, %v1436
  %v1766 = vmax.f32 %v1460, %v1474
  %v1767 = vmax.f32 %v1484, %v1467
  %v1768 = vmax.f32 %v1481, %v1483
  %v1769 = vmax.f32 %v1485, %v1509
  %v1770 = vmax.f32 %v1523, %v1531
  %v1771 = vmax.f32 %v1533, %v1516
  %v1772 = vmax.f32 %v1530, %v1532
  %v1773 = vmax.f32 %v1534, %v1558
  %v1774 = vmax.f32 %v1572, %v1580
  %v1775 = vmax.f32 %v1582, %v1565
  %v1776 = vmax.f32 %v1579, %v1581
  %v1777 = vmax.f32 %v1583, %v1607
  %v1778 = vmax.f32 %v1621, %v1629
  %v1779 = vmax.f32 %v1631, %v1614
  %v1780 = vmax.f32 %v1628, %v1630
  %v1781 = vmax.f32 %v1632, %v1656
  %v1782 = vmax.f32 %v1670, %v1678
  %v1783 = vmax.f32 %v1679, %v1663
  %v1784 = vmax.f32 %v1750, %v1286
  %v1785 = vmax.f32 %v1751, %v1271
  %v1786 = vmax.f32 %v1752, %v1287
  %v1787 = vmax.f32 %v1753, %v1313
  %v1788 = vmax.f32 %v1754, %v1335
  %v1789 = vmax.f32 %v1755, %v1320
  %v1790 = vmax.f32 %v1756, %v1336
  %v1791 = vmax.f32 %v1757, %v1362
  %v1792 = vmax.f32 %v1758, %v1384
  %v1793 = vmax.f32 %v1759, %v1369
  %v1794 = vmax.f32 %v1760, %v1385
  %v1795 = vmax.f32 %v1761, %v1411
  %v1796 = vmax.f32 %v1762, %v1433
  %v1797 = vmax.f32 %v1763, %v1418
  %v1798 = vmax.f32 %v1764, %v1434
  %v1799 = vmax.f32 %v1765, %v1460
  %v1800 = vmax.f32 %v1766, %v1482
  %v1801 = vmax.f32 %v1767, %v1481
  %v1802 = vmax.f32 %v1768, %v1485
  %v1803 = vmax.f32 %v1769, %v1523
  %v1804 = vmax.f32 %v1770, %v1533
  %v1805 = vmax.f32 %v1771, %v1530
  %v1806 = vmax.f32 %v1772, %v1534
  %v1807 = vmax.f32 %v1773, %v1572
  %v1808 = vmax.f32 %v1774, %v1582
  %v1809 = vmax.f32 %v1775, %v1579
  %v1810 = vmax.f32 %v1776, %v1583
  %v1811 = vmax.f32 %v1777, %v1621
  %v1812 = vmax.f32 %v1778, %v1631
  %v1813 = vmax.f32 %v1779, %v1628
  %v1814 = vmax.f32 %v1780, %v1632
  %v1815 = vmax.f32 %v1781, %v1670
  %v1816 = vmax.f32 %v1782, %v1679
  %v1817 = vmax.f32 %v1783, %v1677
  %v1820 = vcombine.low %v1784, %v1801
  %v1822 = vunpack.c.l.s4 1966171168
  %v1823 = vunpack.c.0.s8 %v1822
  %v1824 = vlaneseq
  %v1825 = vshrl.u32 %v1824, 7
  %v1826 = vsub.s32 %v1823, %v1825
  %v1827 = vrot.slane %v1820, %v1826
  %v1829 = vunpack.c.l.s4 1966171168
  %v1830 = vunpack.c.0.s8 %v1829
  %v1831 = vlaneseq
  %v1832 = vshrl.u32 %v1831, 7
  %v1833 = vsub.s32 %v1830, %v1832
  %v1834 = vrot.slane %v1827, %v1833
  %v1838 = vcombine.low %v1785, %v1802
  %v1840 = vunpack.c.l.s4 1966171168
  %v1841 = vunpack.c.0.s8 %v1840
  %v1842 = vlaneseq
  %v1843 = vshrl.u32 %v1842, 7
  %v1844 = vsub.s32 %v1841, %v1843
  %v1845 = vrot.slane %v1838, %v1844
  %v1847 = vunpack.c.l.s4 1966171168
  %v1848 = vunpack.c.0.s8 %v1847
  %v1849 = vlaneseq
  %v1850 = vshrl.u32 %v1849, 7
  %v1851 = vsub.s32 %v1848, %v1850
  %v1852 = vrot.slane %v1845, %v1851
  %1853 = vrot.lane.b32.xlu0 %v1852, 64
  %v1854 = vpop.permute.xlu0 %1853
  %v1858 = vcombine.low %v1786, %v1803
  %v1860 = vunpack.c.l.s4 1966171168
  %v1861 = vunpack.c.0.s8 %v1860
  %v1862 = vlaneseq
  %v1863 = vshrl.u32 %v1862, 7
  %v1864 = vsub.s32 %v1861, %v1863
  %v1865 = vrot.slane %v1858, %v1864
  %v1867 = vunpack.c.l.s4 1966171168
  %v1868 = vunpack.c.0.s8 %v1867
  %v1869 = vlaneseq
  %v1870 = vshrl.u32 %v1869, 7
  %v1871 = vsub.s32 %v1868, %v1870
  %v1872 = vrot.slane %v1865, %v1871
  %v1876 = vcombine.low %v1787, %v1804
  %v1878 = vunpack.c.l.s4 1966171168
  %v1879 = vunpack.c.0.s8 %v1878
  %v1880 = vlaneseq
  %v1881 = vshrl.u32 %v1880, 7
  %v1882 = vsub.s32 %v1879, %v1881
  %v1883 = vrot.slane %v1876, %v1882
  %v1885 = vunpack.c.l.s4 1966171168
  %v1886 = vunpack.c.0.s8 %v1885
  %v1887 = vlaneseq
  %v1888 = vshrl.u32 %v1887, 7
  %v1889 = vsub.s32 %v1886, %v1888
  %v1890 = vrot.slane %v1883, %v1889
  %1891 = vrot.lane.b32.xlu0 %v1890, 64
  %v1892 = vpop.permute.xlu0 %1891
  %v1896 = vcombine.low %v1788, %v1805
  %v1898 = vunpack.c.l.s4 1966171168
  %v1899 = vunpack.c.0.s8 %v1898
  %v1900 = vlaneseq
  %v1901 = vshrl.u32 %v1900, 7
  %v1902 = vsub.s32 %v1899, %v1901
  %v1903 = vrot.slane %v1896, %v1902
  %v1905 = vunpack.c.l.s4 1966171168
  %v1906 = vunpack.c.0.s8 %v1905
  %v1907 = vlaneseq
  %v1908 = vshrl.u32 %v1907, 7
  %v1909 = vsub.s32 %v1906, %v1908
  %v1910 = vrot.slane %v1903, %v1909
  %v1914 = vcombine.low %v1789, %v1806
  %v1916 = vunpack.c.l.s4 1966171168
  %v1917 = vunpack.c.0.s8 %v1916
  %v1918 = vlaneseq
  %v1919 = vshrl.u32 %v1918, 7
  %v1920 = vsub.s32 %v1917, %v1919
  %v1921 = vrot.slane %v1914, %v1920
  %v1923 = vunpack.c.l.s4 1966171168
  %v1924 = vunpack.c.0.s8 %v1923
  %v1925 = vlaneseq
  %v1926 = vshrl.u32 %v1925, 7
  %v1927 = vsub.s32 %v1924, %v1926
  %v1928 = vrot.slane %v1921, %v1927
  %1929 = vrot.lane.b32.xlu0 %v1928, 64
  %v1930 = vpop.permute.xlu0 %1929
  %v1934 = vcombine.low %v1790, %v1807
  %v1936 = vunpack.c.l.s4 1966171168
  %v1937 = vunpack.c.0.s8 %v1936
  %v1938 = vlaneseq
  %v1939 = vshrl.u32 %v1938, 7
  %v1940 = vsub.s32 %v1937, %v1939
  %v1941 = vrot.slane %v1934, %v1940
  %v1943 = vunpack.c.l.s4 1966171168
  %v1944 = vunpack.c.0.s8 %v1943
  %v1945 = vlaneseq
  %v1946 = vshrl.u32 %v1945, 7
  %v1947 = vsub.s32 %v1944, %v1946
  %v1948 = vrot.slane %v1941, %v1947
  %v1952 = vcombine.low %v1791, %v1808
  %v1954 = vunpack.c.l.s4 1966171168
  %v1955 = vunpack.c.0.s8 %v1954
  %v1956 = vlaneseq
  %v1957 = vshrl.u32 %v1956, 7
  %v1958 = vsub.s32 %v1955, %v1957
  %v1959 = vrot.slane %v1952, %v1958
  %v1961 = vunpack.c.l.s4 1966171168
  %v1962 = vunpack.c.0.s8 %v1961
  %v1963 = vlaneseq
  %v1964 = vshrl.u32 %v1963, 7
  %v1965 = vsub.s32 %v1962, %v1964
  %v1966 = vrot.slane %v1959, %v1965
  %1967 = vrot.lane.b32.xlu0 %v1966, 64
  %v1968 = vpop.permute.xlu0 %1967
  %v1972 = vcombine.low %v1792, %v1809
  %v1974 = vunpack.c.l.s4 1966171168
  %v1975 = vunpack.c.0.s8 %v1974
  %v1976 = vlaneseq
  %v1977 = vshrl.u32 %v1976, 7
  %v1978 = vsub.s32 %v1975, %v1977
  %v1979 = vrot.slane %v1972, %v1978
  %v1981 = vunpack.c.l.s4 1966171168
  %v1982 = vunpack.c.0.s8 %v1981
  %v1983 = vlaneseq
  %v1984 = vshrl.u32 %v1983, 7
  %v1985 = vsub.s32 %v1982, %v1984
  %v1986 = vrot.slane %v1979, %v1985
  %v1990 = vcombine.low %v1793, %v1810
  %v1992 = vunpack.c.l.s4 1966171168
  %v1993 = vunpack.c.0.s8 %v1992
  %v1994 = vlaneseq
  %v1995 = vshrl.u32 %v1994, 7
  %v1996 = vsub.s32 %v1993, %v1995
  %v1997 = vrot.slane %v1990, %v1996
  %v1999 = vunpack.c.l.s4 1966171168
  %v2000 = vunpack.c.0.s8 %v1999
  %v2001 = vlaneseq
  %v2002 = vshrl.u32 %v2001, 7
  %v2003 = vsub.s32 %v2000, %v2002
  %v2004 = vrot.slane %v1997, %v2003
  %2005 = vrot.lane.b32.xlu0 %v2004, 64
  %v2006 = vpop.permute.xlu0 %2005
  %v2010 = vcombine.low %v1794, %v1811
  %v2012 = vunpack.c.l.s4 1966171168
  %v2013 = vunpack.c.0.s8 %v2012
  %v2014 = vlaneseq
  %v2015 = vshrl.u32 %v2014, 7
  %v2016 = vsub.s32 %v2013, %v2015
  %v2017 = vrot.slane %v2010, %v2016
  %v2019 = vunpack.c.l.s4 1966171168
  %v2020 = vunpack.c.0.s8 %v2019
  %v2021 = vlaneseq
  %v2022 = vshrl.u32 %v2021, 7
  %v2023 = vsub.s32 %v2020, %v2022
  %v2024 = vrot.slane %v2017, %v2023
  %v2028 = vcombine.low %v1795, %v1812
  %v2030 = vunpack.c.l.s4 1966171168
  %v2031 = vunpack.c.0.s8 %v2030
  %v2032 = vlaneseq
  %v2033 = vshrl.u32 %v2032, 7
  %v2034 = vsub.s32 %v2031, %v2033
  %v2035 = vrot.slane %v2028, %v2034
  %v2037 = vunpack.c.l.s4 1966171168
  %v2038 = vunpack.c.0.s8 %v2037
  %v2039 = vlaneseq
  %v2040 = vshrl.u32 %v2039, 7
  %v2041 = vsub.s32 %v2038, %v2040
  %v2042 = vrot.slane %v2035, %v2041
  %2043 = vrot.lane.b32.xlu0 %v2042, 64
  %v2044 = vpop.permute.xlu0 %2043
  %v2048 = vcombine.low %v1796, %v1813
  %v2050 = vunpack.c.l.s4 1966171168
  %v2051 = vunpack.c.0.s8 %v2050
  %v2052 = vlaneseq
  %v2053 = vshrl.u32 %v2052, 7
  %v2054 = vsub.s32 %v2051, %v2053
  %v2055 = vrot.slane %v2048, %v2054
  %v2057 = vunpack.c.l.s4 1966171168
  %v2058 = vunpack.c.0.s8 %v2057
  %v2059 = vlaneseq
  %v2060 = vshrl.u32 %v2059, 7
  %v2061 = vsub.s32 %v2058, %v2060
  %v2062 = vrot.slane %v2055, %v2061
  %v2066 = vcombine.low %v1797, %v1814
  %v2068 = vunpack.c.l.s4 1966171168
  %v2069 = vunpack.c.0.s8 %v2068
  %v2070 = vlaneseq
  %v2071 = vshrl.u32 %v2070, 7
  %v2072 = vsub.s32 %v2069, %v2071
  %v2073 = vrot.slane %v2066, %v2072
  %v2075 = vunpack.c.l.s4 1966171168
  %v2076 = vunpack.c.0.s8 %v2075
  %v2077 = vlaneseq
  %v2078 = vshrl.u32 %v2077, 7
  %v2079 = vsub.s32 %v2076, %v2078
  %v2080 = vrot.slane %v2073, %v2079
  %2081 = vrot.lane.b32.xlu0 %v2080, 64
  %v2082 = vpop.permute.xlu0 %2081
  %v2086 = vcombine.low %v1798, %v1815
  %v2088 = vunpack.c.l.s4 1966171168
  %v2089 = vunpack.c.0.s8 %v2088
  %v2090 = vlaneseq
  %v2091 = vshrl.u32 %v2090, 7
  %v2092 = vsub.s32 %v2089, %v2091
  %v2093 = vrot.slane %v2086, %v2092
  %v2095 = vunpack.c.l.s4 1966171168
  %v2096 = vunpack.c.0.s8 %v2095
  %v2097 = vlaneseq
  %v2098 = vshrl.u32 %v2097, 7
  %v2099 = vsub.s32 %v2096, %v2098
  %v2100 = vrot.slane %v2093, %v2099
  %v2104 = vcombine.low %v1799, %v1816
  %v2106 = vunpack.c.l.s4 1966171168
  %v2107 = vunpack.c.0.s8 %v2106
  %v2108 = vlaneseq
  %v2109 = vshrl.u32 %v2108, 7
  %v2110 = vsub.s32 %v2107, %v2109
  %v2111 = vrot.slane %v2104, %v2110
  %v2113 = vunpack.c.l.s4 1966171168
  %v2114 = vunpack.c.0.s8 %v2113
  %v2115 = vlaneseq
  %v2116 = vshrl.u32 %v2115, 7
  %v2117 = vsub.s32 %v2114, %v2116
  %v2118 = vrot.slane %v2111, %v2117
  %2119 = vrot.lane.b32.xlu0 %v2118, 64
  %v2120 = vpop.permute.xlu0 %2119
  %v2124 = vcombine.low %v1800, %v1817
  %v2126 = vunpack.c.l.s4 1966171168
  %v2127 = vunpack.c.0.s8 %v2126
  %v2128 = vlaneseq
  %v2129 = vshrl.u32 %v2128, 7
  %v2130 = vsub.s32 %v2127, %v2129
  %v2131 = vrot.slane %v2124, %v2130
  %v2133 = vunpack.c.l.s4 1966171168
  %v2134 = vunpack.c.0.s8 %v2133
  %v2135 = vlaneseq
  %v2136 = vshrl.u32 %v2135, 7
  %v2137 = vsub.s32 %v2134, %v2136
  %v2138 = vrot.slane %v2131, %v2137
  %v2139 = vsel %vm1137, %v1834, %v1854
  %v2140 = vsel %vm1137, %v1872, %v1892
  %v2141 = vsel %vm1137, %v1910, %v1930
  %v2142 = vsel %vm1137, %v1948, %v1968
  %v2143 = vsel %vm1137, %v1986, %v2006
  %v2144 = vsel %vm1137, %v2024, %v2044
  %v2145 = vsel %vm1137, %v2062, %v2082
  %v2146 = vsel %vm1137, %v2100, %v2120
  %v2147 = vld [vmem:[%s1] sm:$0xff]
  %v2148 = vld [vmem:[%s1 + $0x8] sm:$0xff]
  %v2149 = vld [vmem:[%s1 + $0x10] sm:$0xff]
  %v2150 = vld [vmem:[%s1 + $0x18] sm:$0xff]
  %v2151 = vld [vmem:[%s1 + $0x20] sm:$0xff]
  %v2152 = vld [vmem:[%s1 + $0x28] sm:$0xff]
  %v2153 = vld [vmem:[%s1 + $0x30] sm:$0xff]
  %v2154 = vld [vmem:[%s1 + $0x38] sm:$0xff]
  %v2155 = vld [vmem:[%s1 + $0x40] sm:$0xff]
  %v2156 = vld [vmem:[%s1 + $0x48] sm:$0xff]
  %v2157 = vld [vmem:[%s1 + $0x50] sm:$0xff]
  %v2158 = vld [vmem:[%s1 + $0x58] sm:$0xff]
  %v2159 = vld [vmem:[%s1 + $0x60] sm:$0xff]
  %v2160 = vld [vmem:[%s1 + $0x68] sm:$0xff]
  %v2161 = vld [vmem:[%s1 + $0x70] sm:$0xff]
  %v2162 = vld [vmem:[%s1 + $0x78] sm:$0xff]
  %v2163 = vld [vmem:[%s1 + $0x80] sm:$0xff]
  %v2164 = vld [vmem:[%s1 + $0x88] sm:$0xff]
  %v2165 = vld [vmem:[%s1 + $0x90] sm:$0xff]
  %v2166 = vld [vmem:[%s1 + $0x98] sm:$0xff]
  %v2167 = vld [vmem:[%s1 + $0xa0] sm:$0xff]
  %v2168 = vld [vmem:[%s1 + $0xa8] sm:$0xff]
  %v2169 = vld [vmem:[%s1 + $0xb0] sm:$0xff]
  %v2170 = vld [vmem:[%s1 + $0xb8] sm:$0xff]
  %v2171 = vld [vmem:[%s1 + $0xc0] sm:$0xff]
  %v2172 = vld [vmem:[%s1 + $0xc8] sm:$0xff]
  %v2173 = vld [vmem:[%s1 + $0xd0] sm:$0xff]
  %v2174 = vld [vmem:[%s1 + $0xd8] sm:$0xff]
  %v2175 = vld [vmem:[%s1 + $0xe0] sm:$0xff]
  %v2176 = vld [vmem:[%s1 + $0xe8] sm:$0xff]
  %v2177 = vld [vmem:[%s1 + $0xf0] sm:$0xff]
  %v2178 = vld [vmem:[%s1 + $0xf8] sm:$0xff]
  %v2179 = vld [vmem:[%s1 + $0x100] sm:$0xff]
  %v2180 = vld [vmem:[%s1 + $0x108] sm:$0xff]
  %v2181 = vld [vmem:[%s1 + $0x110] sm:$0xff]
  %v2182 = vld [vmem:[%s1 + $0x118] sm:$0xff]
  %v2183 = vld [vmem:[%s1 + $0x120] sm:$0xff]
  %v2184 = vld [vmem:[%s1 + $0x128] sm:$0xff]
  %v2185 = vld [vmem:[%s1 + $0x130] sm:$0xff]
  %v2186 = vld [vmem:[%s1 + $0x138] sm:$0xff]
  %v2187 = vld [vmem:[%s1 + $0x140] sm:$0xff]
  %v2188 = vld [vmem:[%s1 + $0x148] sm:$0xff]
  %v2189 = vld [vmem:[%s1 + $0x150] sm:$0xff]
  %v2190 = vld [vmem:[%s1 + $0x158] sm:$0xff]
  %v2191 = vld [vmem:[%s1 + $0x160] sm:$0xff]
  %v2192 = vld [vmem:[%s1 + $0x168] sm:$0xff]
  %v2193 = vld [vmem:[%s1 + $0x170] sm:$0xff]
  %v2194 = vld [vmem:[%s1 + $0x178] sm:$0xff]
  %v2195 = vld [vmem:[%s1 + $0x180] sm:$0xff]
  %v2196 = vld [vmem:[%s1 + $0x188] sm:$0xff]
  %v2197 = vld [vmem:[%s1 + $0x190] sm:$0xff]
  %v2198 = vld [vmem:[%s1 + $0x198] sm:$0xff]
  %v2199 = vld [vmem:[%s1 + $0x1a0] sm:$0xff]
  %v2200 = vld [vmem:[%s1 + $0x1a8] sm:$0xff]
  %v2201 = vld [vmem:[%s1 + $0x1b0] sm:$0xff]
  %v2202 = vld [vmem:[%s1 + $0x1b8] sm:$0xff]
  %v2203 = vld [vmem:[%s1 + $0x1c0] sm:$0xff]
  %v2204 = vld [vmem:[%s1 + $0x1c8] sm:$0xff]
  %v2205 = vld [vmem:[%s1 + $0x1d0] sm:$0xff]
  %v2206 = vld [vmem:[%s1 + $0x1d8] sm:$0xff]
  %v2207 = vld [vmem:[%s1 + $0x1e0] sm:$0xff]
  %v2208 = vld [vmem:[%s1 + $0x1e8] sm:$0xff]
  %v2209 = vld [vmem:[%s1 + $0x1f0] sm:$0xff]
  %v2210 = vld [vmem:[%s1 + $0x1f8] sm:$0xff]
  %v2211 = vld [vmem:[%s1 + $0x200] sm:$0xff]
  %v2212 = vld [vmem:[%s1 + $0x208] sm:$0xff]
  %v2213 = vld [vmem:[%s1 + $0x210] sm:$0xff]
  %v2214 = vld [vmem:[%s1 + $0x218] sm:$0xff]
  %v2215 = vld [vmem:[%s1 + $0x220] sm:$0xff]
  %v2216 = vld [vmem:[%s1 + $0x228] sm:$0xff]
  %v2217 = vld [vmem:[%s1 + $0x230] sm:$0xff]
  %v2218 = vld [vmem:[%s1 + $0x238] sm:$0xff]
  %v2219 = vld [vmem:[%s1 + $0x240] sm:$0xff]
  %v2220 = vld [vmem:[%s1 + $0x248] sm:$0xff]
  %v2221 = vld [vmem:[%s1 + $0x250] sm:$0xff]
  %v2222 = vld [vmem:[%s1 + $0x258] sm:$0xff]
  %v2223 = vld [vmem:[%s1 + $0x260] sm:$0xff]
  %v2224 = vld [vmem:[%s1 + $0x268] sm:$0xff]
  %v2225 = vld [vmem:[%s1 + $0x270] sm:$0xff]
  %v2226 = vld [vmem:[%s1 + $0x278] sm:$0xff]
  %v2227 = vld [vmem:[%s1 + $0x280] sm:$0xff]
  %v2228 = vld [vmem:[%s1 + $0x288] sm:$0xff]
  %v2229 = vld [vmem:[%s1 + $0x290] sm:$0xff]
  %v2230 = vld [vmem:[%s1 + $0x298] sm:$0xff]
  %v2231 = vld [vmem:[%s1 + $0x2a0] sm:$0xff]
  %v2232 = vld [vmem:[%s1 + $0x2a8] sm:$0xff]
  %v2233 = vld [vmem:[%s1 + $0x2b0] sm:$0xff]
  %v2234 = vld [vmem:[%s1 + $0x2b8] sm:$0xff]
  %v2235 = vld [vmem:[%s1 + $0x2c0] sm:$0xff]
  %v2236 = vld [vmem:[%s1 + $0x2c8] sm:$0xff]
  %v2237 = vld [vmem:[%s1 + $0x2d0] sm:$0xff]
  %v2238 = vld [vmem:[%s1 + $0x2d8] sm:$0xff]
  %v2239 = vld [vmem:[%s1 + $0x2e0] sm:$0xff]
  %v2240 = vld [vmem:[%s1 + $0x2e8] sm:$0xff]
  %v2241 = vld [vmem:[%s1 + $0x2f0] sm:$0xff]
  %v2242 = vld [vmem:[%s1 + $0x2f8] sm:$0xff]
  %v2243 = vld [vmem:[%s1 + $0x300] sm:$0xff]
  %v2244 = vld [vmem:[%s1 + $0x308] sm:$0xff]
  %v2245 = vld [vmem:[%s1 + $0x310] sm:$0xff]
  %v2246 = vld [vmem:[%s1 + $0x318] sm:$0xff]
  %v2247 = vld [vmem:[%s1 + $0x320] sm:$0xff]
  %v2248 = vld [vmem:[%s1 + $0x328] sm:$0xff]
  %v2249 = vld [vmem:[%s1 + $0x330] sm:$0xff]
  %v2250 = vld [vmem:[%s1 + $0x338] sm:$0xff]
  %v2251 = vld [vmem:[%s1 + $0x340] sm:$0xff]
  %v2252 = vld [vmem:[%s1 + $0x348] sm:$0xff]
  %v2253 = vld [vmem:[%s1 + $0x350] sm:$0xff]
  %v2254 = vld [vmem:[%s1 + $0x358] sm:$0xff]
  %v2255 = vld [vmem:[%s1 + $0x360] sm:$0xff]
  %v2256 = vld [vmem:[%s1 + $0x368] sm:$0xff]
  %v2257 = vld [vmem:[%s1 + $0x370] sm:$0xff]
  %v2258 = vld [vmem:[%s1 + $0x378] sm:$0xff]
  %v2259 = vld [vmem:[%s1 + $0x380] sm:$0xff]
  %v2260 = vld [vmem:[%s1 + $0x388] sm:$0xff]
  %v2261 = vld [vmem:[%s1 + $0x390] sm:$0xff]
  %v2262 = vld [vmem:[%s1 + $0x398] sm:$0xff]
  %v2263 = vld [vmem:[%s1 + $0x3a0] sm:$0xff]
  %v2264 = vld [vmem:[%s1 + $0x3a8] sm:$0xff]
  %v2265 = vld [vmem:[%s1 + $0x3b0] sm:$0xff]
  %v2266 = vld [vmem:[%s1 + $0x3b8] sm:$0xff]
  %v2267 = vld [vmem:[%s1 + $0x3c0] sm:$0xff]
  %v2268 = vld [vmem:[%s1 + $0x3c8] sm:$0xff]
  %v2269 = vld [vmem:[%s1 + $0x3d0] sm:$0xff]
  %v2270 = vld [vmem:[%s1 + $0x3d8] sm:$0xff]
  %v2271 = vld [vmem:[%s1 + $0x3e0] sm:$0xff]
  %v2272 = vld [vmem:[%s1 + $0x3e8] sm:$0xff]
  %v2273 = vld [vmem:[%s1 + $0x3f0] sm:$0xff]
  %v2274 = vld [vmem:[%s1 + $0x3f8] sm:$0xff]
  %v2275 = vld [vmem:[%s1 + $0x400] sm:$0xff]
  %v2276 = vld [vmem:[%s1 + $0x408] sm:$0xff]
  %v2277 = vld [vmem:[%s1 + $0x410] sm:$0xff]
  %v2278 = vld [vmem:[%s1 + $0x418] sm:$0xff]
  %v2279 = vld [vmem:[%s1 + $0x420] sm:$0xff]
  %v2280 = vld [vmem:[%s1 + $0x428] sm:$0xff]
  %v2281 = vld [vmem:[%s1 + $0x430] sm:$0xff]
  %v2282 = vld [vmem:[%s1 + $0x438] sm:$0xff]
  %v2283 = vld [vmem:[%s1 + $0x460] sm:$0x1]
  %v2284 = vlaneseq
  %v2285 = vshrl.u32 %v2284, 7
  %v2286 = vsub.s32 0, %v2285
  %v2287 = vrot.slane %v2283, %v2286
  %v2288 = vsel %vm1137, %v2138, 0
  %2290 = vmatprep.subr.mxu0 0.0
  %2291 = vmatpush1.msra.mxu0 %v2162
  %2292 = vmatprep.subr.mxu0 0.0
  %2293 = vmatpush1.msra.mxu0 %v2161
  %2294 = vmatprep.subr.mxu0 0.0
  %2295 = vmatpush1.msra.mxu0 %v2160
  %2296 = vmatprep.subr.mxu0 0.0
  %2297 = vmatpush1.msra.mxu0 %v2159
  %2298 = vmatprep.subr.mxu0 0.0
  %2299 = vmatpush1.msra.mxu0 %v2158
  %2300 = vmatprep.subr.mxu0 0.0
  %2301 = vmatpush1.msra.mxu0 %v2157
  %2302 = vmatprep.subr.mxu0 0.0
  %2303 = vmatpush1.msra.mxu0 %v2156
  %2304 = vmatprep.subr.mxu0 0.0
  %2305 = vmatpush1.msra.mxu0 %v2155
  %2306 = vmatprep.subr.mxu0 0.0
  %2307 = vmatpush1.msra.mxu0 %v2154
  %2308 = vmatprep.subr.mxu0 0.0
  %2309 = vmatpush1.msra.mxu0 %v2153
  %2310 = vmatprep.subr.mxu0 0.0
  %2311 = vmatpush1.msra.mxu0 %v2152
  %2312 = vmatprep.subr.mxu0 0.0
  %2313 = vmatpush1.msra.mxu0 %v2151
  %2314 = vmatprep.subr.mxu0 0.0
  %2315 = vmatpush1.msra.mxu0 %v2150
  %2316 = vmatprep.subr.mxu0 0.0
  %2317 = vmatpush1.msra.mxu0 %v2149
  %2318 = vmatprep.subr.mxu0 0.0
  %2319 = vmatpush1.msra.mxu0 %v2148
  %2320 = vmatprep.subr.mxu0 0.0
  %2321 = vmatpush1.msra.mxu0 %v2147
  %2322 = vmatprep.subr.mxu0 0.0
  %2323 = vmatpush2.msra.mxu0 %v2178
  %2324 = vmatprep.subr.mxu0 0.0
  %2325 = vmatpush2.msra.mxu0 %v2177
  %2326 = vmatprep.subr.mxu0 0.0
  %2327 = vmatpush2.msra.mxu0 %v2176
  %2328 = vmatprep.subr.mxu0 0.0
  %2329 = vmatpush2.msra.mxu0 %v2175
  %2330 = vmatprep.subr.mxu0 0.0
  %2331 = vmatpush2.msra.mxu0 %v2174
  %2332 = vmatprep.subr.mxu0 0.0
  %2333 = vmatpush2.msra.mxu0 %v2173
  %2334 = vmatprep.subr.mxu0 0.0
  %2335 = vmatpush2.msra.mxu0 %v2172
  %2336 = vmatprep.subr.mxu0 0.0
  %2337 = vmatpush2.msra.mxu0 %v2171
  %2338 = vmatprep.subr.mxu0 0.0
  %2339 = vmatpush2.msra.mxu0 %v2170
  %2340 = vmatprep.subr.mxu0 0.0
  %2341 = vmatpush2.msra.mxu0 %v2169
  %2342 = vmatprep.subr.mxu0 0.0
  %2343 = vmatpush2.msra.mxu0 %v2168
  %2344 = vmatprep.subr.mxu0 0.0
  %2345 = vmatpush2.msra.mxu0 %v2167
  %2346 = vmatprep.subr.mxu0 0.0
  %2347 = vmatpush2.msra.mxu0 %v2166
  %2348 = vmatprep.subr.mxu0 0.0
  %2349 = vmatpush2.msra.mxu0 %v2165
  %2350 = vmatprep.subr.mxu0 0.0
  %2351 = vmatpush2.msra.mxu0 %v2164
  %2352 = vmatprep.subr.mxu0 0.0
  %2353 = vmatpush2.msra.mxu0 %v2163
  %2354 = vmatprep.mubr.f32.mxu0 %v2140
  %2355 = vmatmul.mubr.f32.gmra.mxu0 %v2139
  %v2356 = vpop.f32.mrf.mxu0
  %v2357 = vadd.f32 %v2287, %v2356
  %v2358 = vpop.f32.mrf.mxu0
  %2359 = vdwg.mxu0
  %2360 = vmatprep.subr.mxu0 0.0
  %2361 = vmatpush1.msra.mxu0 %v2194
  %2362 = vmatprep.subr.mxu0 0.0
  %2363 = vmatpush1.msra.mxu0 %v2193
  %2364 = vmatprep.subr.mxu0 0.0
  %2365 = vmatpush1.msra.mxu0 %v2192
  %2366 = vmatprep.subr.mxu0 0.0
  %2367 = vmatpush1.msra.mxu0 %v2191
  %2368 = vmatprep.subr.mxu0 0.0
  %2369 = vmatpush1.msra.mxu0 %v2190
  %2370 = vmatprep.subr.mxu0 0.0
  %2371 = vmatpush1.msra.mxu0 %v2189
  %2372 = vmatprep.subr.mxu0 0.0
  %2373 = vmatpush1.msra.mxu0 %v2188
  %2374 = vmatprep.subr.mxu0 0.0
  %2375 = vmatpush1.msra.mxu0 %v2187
  %2376 = vmatprep.subr.mxu0 0.0
  %2377 = vmatpush1.msra.mxu0 %v2186
  %2378 = vmatprep.subr.mxu0 0.0
  %2379 = vmatpush1.msra.mxu0 %v2185
  %2380 = vmatprep.subr.mxu0 0.0
  %2381 = vmatpush1.msra.mxu0 %v2184
  %2382 = vmatprep.subr.mxu0 0.0
  %2383 = vmatpush1.msra.mxu0 %v2183
  %2384 = vmatprep.subr.mxu0 0.0
  %2385 = vmatpush1.msra.mxu0 %v2182
  %2386 = vmatprep.subr.mxu0 0.0
  %2387 = vmatpush1.msra.mxu0 %v2181
  %2388 = vmatprep.subr.mxu0 0.0
  %2389 = vmatpush1.msra.mxu0 %v2180
  %2390 = vmatprep.subr.mxu0 0.0
  %2391 = vmatpush1.msra.mxu0 %v2179
  %2392 = vmatprep.subr.mxu0 0.0
  %2393 = vmatpush2.msra.mxu0 %v2210
  %2394 = vmatprep.subr.mxu0 0.0
  %2395 = vmatpush2.msra.mxu0 %v2209
  %2396 = vmatprep.subr.mxu0 0.0
  %2397 = vmatpush2.msra.mxu0 %v2208
  %2398 = vmatprep.subr.mxu0 0.0
  %2399 = vmatpush2.msra.mxu0 %v2207
  %2400 = vmatprep.subr.mxu0 0.0
  %2401 = vmatpush2.msra.mxu0 %v2206
  %2402 = vmatprep.subr.mxu0 0.0
  %2403 = vmatpush2.msra.mxu0 %v2205
  %2404 = vmatprep.subr.mxu0 0.0
  %2405 = vmatpush2.msra.mxu0 %v2204
  %2406 = vmatprep.subr.mxu0 0.0
  %2407 = vmatpush2.msra.mxu0 %v2203
  %2408 = vmatprep.subr.mxu0 0.0
  %2409 = vmatpush2.msra.mxu0 %v2202
  %2410 = vmatprep.subr.mxu0 0.0
  %2411 = vmatpush2.msra.mxu0 %v2201
  %2412 = vmatprep.subr.mxu0 0.0
  %2413 = vmatpush2.msra.mxu0 %v2200
  %2414 = vmatprep.subr.mxu0 0.0
  %2415 = vmatpush2.msra.mxu0 %v2199
  %2416 = vmatprep.subr.mxu0 0.0
  %2417 = vmatpush2.msra.mxu0 %v2198
  %2418 = vmatprep.subr.mxu0 0.0
  %2419 = vmatpush2.msra.mxu0 %v2197
  %2420 = vmatprep.subr.mxu0 0.0
  %2421 = vmatpush2.msra.mxu0 %v2196
  %2422 = vmatprep.subr.mxu0 0.0
  %2423 = vmatpush2.msra.mxu0 %v2195
  %2424 = vmatprep.mubr.f32.mxu0 %v2142
  %2425 = vmatmul.mubr.f32.gmra.mxu0 %v2141
  %v2426 = vpop.f32.mrf.mxu0
  %v2427 = vadd.f32 %v2357, %v2426
  %v2428 = vpop.f32.mrf.mxu0
  %2429 = vdwg.mxu0
  %2430 = vmatprep.subr.mxu0 0.0
  %2431 = vmatpush1.msra.mxu0 %v2226
  %2432 = vmatprep.subr.mxu0 0.0
  %2433 = vmatpush1.msra.mxu0 %v2225
  %2434 = vmatprep.subr.mxu0 0.0
  %2435 = vmatpush1.msra.mxu0 %v2224
  %2436 = vmatprep.subr.mxu0 0.0
  %2437 = vmatpush1.msra.mxu0 %v2223
  %2438 = vmatprep.subr.mxu0 0.0
  %2439 = vmatpush1.msra.mxu0 %v2222
  %2440 = vmatprep.subr.mxu0 0.0
  %2441 = vmatpush1.msra.mxu0 %v2221
  %2442 = vmatprep.subr.mxu0 0.0
  %2443 = vmatpush1.msra.mxu0 %v2220
  %2444 = vmatprep.subr.mxu0 0.0
  %2445 = vmatpush1.msra.mxu0 %v2219
  %2446 = vmatprep.subr.mxu0 0.0
  %2447 = vmatpush1.msra.mxu0 %v2218
  %2448 = vmatprep.subr.mxu0 0.0
  %2449 = vmatpush1.msra.mxu0 %v2217
  %2450 = vmatprep.subr.mxu0 0.0
  %2451 = vmatpush1.msra.mxu0 %v2216
  %2452 = vmatprep.subr.mxu0 0.0
  %2453 = vmatpush1.msra.mxu0 %v2215
  %2454 = vmatprep.subr.mxu0 0.0
  %2455 = vmatpush1.msra.mxu0 %v2214
  %2456 = vmatprep.subr.mxu0 0.0
  %2457 = vmatpush1.msra.mxu0 %v2213
  %2458 = vmatprep.subr.mxu0 0.0
  %2459 = vmatpush1.msra.mxu0 %v2212
  %2460 = vmatprep.subr.mxu0 0.0
  %2461 = vmatpush1.msra.mxu0 %v2211
  %2462 = vmatprep.subr.mxu0 0.0
  %2463 = vmatpush2.msra.mxu0 %v2242
  %2464 = vmatprep.subr.mxu0 0.0
  %2465 = vmatpush2.msra.mxu0 %v2241
  %2466 = vmatprep.subr.mxu0 0.0
  %2467 = vmatpush2.msra.mxu0 %v2240
  %2468 = vmatprep.subr.mxu0 0.0
  %2469 = vmatpush2.msra.mxu0 %v2239
  %2470 = vmatprep.subr.mxu0 0.0
  %2471 = vmatpush2.msra.mxu0 %v2238
  %2472 = vmatprep.subr.mxu0 0.0
  %2473 = vmatpush2.msra.mxu0 %v2237
  %2474 = vmatprep.subr.mxu0 0.0
  %2475 = vmatpush2.msra.mxu0 %v2236
  %2476 = vmatprep.subr.mxu0 0.0
  %2477 = vmatpush2.msra.mxu0 %v2235
  %2478 = vmatprep.subr.mxu0 0.0
  %2479 = vmatpush2.msra.mxu0 %v2234
  %2480 = vmatprep.subr.mxu0 0.0
  %2481 = vmatpush2.msra.mxu0 %v2233
  %2482 = vmatprep.subr.mxu0 0.0
  %2483 = vmatpush2.msra.mxu0 %v2232
  %2484 = vmatprep.subr.mxu0 0.0
  %2485 = vmatpush2.msra.mxu0 %v2231
  %2486 = vmatprep.subr.mxu0 0.0
  %2487 = vmatpush2.msra.mxu0 %v2230
  %2488 = vmatprep.subr.mxu0 0.0
  %2489 = vmatpush2.msra.mxu0 %v2229
  %2490 = vmatprep.subr.mxu0 0.0
  %2491 = vmatpush2.msra.mxu0 %v2228
  %2492 = vmatprep.subr.mxu0 0.0
  %2493 = vmatpush2.msra.mxu0 %v2227
  %2494 = vmatprep.mubr.f32.mxu0 %v2144
  %2495 = vmatmul.mubr.f32.gmra.mxu0 %v2143
  %v2496 = vpop.f32.mrf.mxu0
  %v2497 = vadd.f32 %v2427, %v2496
  %v2498 = vpop.f32.mrf.mxu0
  %2499 = vdwg.mxu0
  %2500 = vmatprep.subr.mxu0 0.0
  %2501 = vmatpush1.msra.mxu0 %v2258
  %2502 = vmatprep.subr.mxu0 0.0
  %2503 = vmatpush1.msra.mxu0 %v2257
  %2504 = vmatprep.subr.mxu0 0.0
  %2505 = vmatpush1.msra.mxu0 %v2256
  %2506 = vmatprep.subr.mxu0 0.0
  %2507 = vmatpush1.msra.mxu0 %v2255
  %2508 = vmatprep.subr.mxu0 0.0
  %2509 = vmatpush1.msra.mxu0 %v2254
  %2510 = vmatprep.subr.mxu0 0.0
  %2511 = vmatpush1.msra.mxu0 %v2253
  %2512 = vmatprep.subr.mxu0 0.0
  %2513 = vmatpush1.msra.mxu0 %v2252
  %2514 = vmatprep.subr.mxu0 0.0
  %2515 = vmatpush1.msra.mxu0 %v2251
  %2516 = vmatprep.subr.mxu0 0.0
  %2517 = vmatpush1.msra.mxu0 %v2250
  %2518 = vmatprep.subr.mxu0 0.0
  %2519 = vmatpush1.msra.mxu0 %v2249
  %2520 = vmatprep.subr.mxu0 0.0
  %2521 = vmatpush1.msra.mxu0 %v2248
  %2522 = vmatprep.subr.mxu0 0.0
  %2523 = vmatpush1.msra.mxu0 %v2247
  %2524 = vmatprep.subr.mxu0 0.0
  %2525 = vmatpush1.msra.mxu0 %v2246
  %2526 = vmatprep.subr.mxu0 0.0
  %2527 = vmatpush1.msra.mxu0 %v2245
  %2528 = vmatprep.subr.mxu0 0.0
  %2529 = vmatpush1.msra.mxu0 %v2244
  %2530 = vmatprep.subr.mxu0 0.0
  %2531 = vmatpush1.msra.mxu0 %v2243
  %2532 = vmatprep.subr.mxu0 0.0
  %2533 = vmatpush2.msra.mxu0 %v2274
  %2534 = vmatprep.subr.mxu0 0.0
  %2535 = vmatpush2.msra.mxu0 %v2273
  %2536 = vmatprep.subr.mxu0 0.0
  %2537 = vmatpush2.msra.mxu0 %v2272
  %2538 = vmatprep.subr.mxu0 0.0
  %2539 = vmatpush2.msra.mxu0 %v2271
  %2540 = vmatprep.subr.mxu0 0.0
  %2541 = vmatpush2.msra.mxu0 %v2270
  %2542 = vmatprep.subr.mxu0 0.0
  %2543 = vmatpush2.msra.mxu0 %v2269
  %2544 = vmatprep.subr.mxu0 0.0
  %2545 = vmatpush2.msra.mxu0 %v2268
  %2546 = vmatprep.subr.mxu0 0.0
  %2547 = vmatpush2.msra.mxu0 %v2267
  %2548 = vmatprep.subr.mxu0 0.0
  %2549 = vmatpush2.msra.mxu0 %v2266
  %2550 = vmatprep.subr.mxu0 0.0
  %2551 = vmatpush2.msra.mxu0 %v2265
  %2552 = vmatprep.subr.mxu0 0.0
  %2553 = vmatpush2.msra.mxu0 %v2264
  %2554 = vmatprep.subr.mxu0 0.0
  %2555 = vmatpush2.msra.mxu0 %v2263
  %2556 = vmatprep.subr.mxu0 0.0
  %2557 = vmatpush2.msra.mxu0 %v2262
  %2558 = vmatprep.subr.mxu0 0.0
  %2559 = vmatpush2.msra.mxu0 %v2261
  %2560 = vmatprep.subr.mxu0 0.0
  %2561 = vmatpush2.msra.mxu0 %v2260
  %2562 = vmatprep.subr.mxu0 0.0
  %2563 = vmatpush2.msra.mxu0 %v2259
  %2564 = vmatprep.mubr.f32.mxu0 %v2146
  %2565 = vmatmul.mubr.f32.gmra.mxu0 %v2145
  %v2566 = vpop.f32.mrf.mxu0
  %v2567 = vadd.f32 %v2497, %v2566
  %v2568 = vpop.f32.mrf.mxu0
  %2569 = vdwg.mxu0
  %2570 = vmatprep.subr.mxu0 0.0
  %2571 = vmatpush1.msra.mxu0 0.0
  %2572 = vmatprep.subr.mxu0 0.0
  %2573 = vmatpush1.msra.mxu0 0.0
  %2574 = vmatprep.subr.mxu0 0.0
  %2575 = vmatpush1.msra.mxu0 0.0
  %2576 = vmatprep.subr.mxu0 0.0
  %2577 = vmatpush1.msra.mxu0 0.0
  %2578 = vmatprep.subr.mxu0 0.0
  %2579 = vmatpush1.msra.mxu0 0.0
  %2580 = vmatprep.subr.mxu0 0.0
  %2581 = vmatpush1.msra.mxu0 0.0
  %2582 = vmatprep.subr.mxu0 0.0
  %2583 = vmatpush1.msra.mxu0 0.0
  %2584 = vmatprep.subr.mxu0 0.0
  %2585 = vmatpush1.msra.mxu0 0.0
  %2586 = vmatprep.subr.mxu0 0.0
  %2587 = vmatpush1.msra.mxu0 %v2282
  %2588 = vmatprep.subr.mxu0 0.0
  %2589 = vmatpush1.msra.mxu0 %v2281
  %2590 = vmatprep.subr.mxu0 0.0
  %2591 = vmatpush1.msra.mxu0 %v2280
  %2592 = vmatprep.subr.mxu0 0.0
  %2593 = vmatpush1.msra.mxu0 %v2279
  %2594 = vmatprep.subr.mxu0 0.0
  %2595 = vmatpush1.msra.mxu0 %v2278
  %2596 = vmatprep.subr.mxu0 0.0
  %2597 = vmatpush1.msra.mxu0 %v2277
  %2598 = vmatprep.subr.mxu0 0.0
  %2599 = vmatpush1.msra.mxu0 %v2276
  %2600 = vmatprep.subr.mxu0 0.0
  %2601 = vmatpush1.msra.mxu0 %v2275
  %2602 = vmatprep.subr.mxu0 0.0
  %2603 = vmatpush2.msra.mxu0 0.0
  %2604 = vmatprep.subr.mxu0 0.0
  %2605 = vmatpush2.msra.mxu0 0.0
  %2606 = vmatprep.subr.mxu0 0.0
  %2607 = vmatpush2.msra.mxu0 0.0
  %2608 = vmatprep.subr.mxu0 0.0
  %2609 = vmatpush2.msra.mxu0 0.0
  %2610 = vmatprep.subr.mxu0 0.0
  %2611 = vmatpush2.msra.mxu0 0.0
  %2612 = vmatprep.subr.mxu0 0.0
  %2613 = vmatpush2.msra.mxu0 0.0
  %2614 = vmatprep.subr.mxu0 0.0
  %2615 = vmatpush2.msra.mxu0 0.0
  %2616 = vmatprep.subr.mxu0 0.0
  %2617 = vmatpush2.msra.mxu0 0.0
  %2618 = vmatprep.subr.mxu0 0.0
  %2619 = vmatpush2.msra.mxu0 0.0
  %2620 = vmatprep.subr.mxu0 0.0
  %2621 = vmatpush2.msra.mxu0 0.0
  %2622 = vmatprep.subr.mxu0 0.0
  %2623 = vmatpush2.msra.mxu0 0.0
  %2624 = vmatprep.subr.mxu0 0.0
  %2625 = vmatpush2.msra.mxu0 0.0
  %2626 = vmatprep.subr.mxu0 0.0
  %2627 = vmatpush2.msra.mxu0 0.0
  %2628 = vmatprep.subr.mxu0 0.0
  %2629 = vmatpush2.msra.mxu0 0.0
  %2630 = vmatprep.subr.mxu0 0.0
  %2631 = vmatpush2.msra.mxu0 0.0
  %2632 = vmatprep.subr.mxu0 0.0
  %2633 = vmatpush2.msra.mxu0 0.0
  %2634 = vmatprep.mubr.f32.mxu0 0.0
  %2635 = vmatmul.mubr.f32.gmra.mxu0 %v2288
  %v2636 = vpop.f32.mrf.mxu0
  %v2637 = vadd.f32 %v2567, %v2636
  %v2638 = vpop.f32.mrf.mxu0
  %2639 = vdwg.mxu0
  %v2640 = vmul.f32 %v2637, 0.2
  %v2641 = vmax.f32 %v2637, %v2640
  %v2642 = vld [vmem:[%s1 + $0x461] sm:$0x1]
  %v2643 = vlaneseq
  %v2644 = vshrl.u32 %v2643, 7
  %v2645 = vsub.s32 0, %v2644
  %v2646 = vrot.slane %v2642, %v2645
  %v2647 = vmul.f32 %v2641, %v2646
  %vm2648 = vcmask 254976
  %v2649 = vsel %vm2648, %v2647, 0.0
  %2650 = vadd.xlane.f32.xlu0 %v2649
  %v2651 = vpop.xlane.xlu0 %2650
  %v2652 = vld [vmem:[%s1 + $0x462] sm:$0x1]
  %v2653 = vlaneseq
  %v2654 = vshrl.u32 %v2653, 7
  %v2655 = vsub.s32 0, %v2654
  %v2656 = vrot.slane %v2652, %v2655
  %v2657 = vadd.f32 %v2651, %v2656
  %vm2658 = vcmask 1024
  %2659 = vst.msk [vmem:[%s2] sm:$0x3] %vm2658, %v2657
  // Predicated region
  $region10: #{discriminator_x.1} parent=0 // pred_check
    _
  $region11: #{discriminator_x.1} parent=0 // pred_check_branch
    %2661 = sbr.rel (0) target = $region13
  $region12: #{discriminator_x.1} parent=0 // pred_region
    _
  $region13: #{discriminator_x.1} parent=0 // pred_fallthru
    _
  // Predicated region
  $region14: #{discriminator_x.1} parent=0 // pred_check
    _
  $region15: #{discriminator_x.1} parent=0 // pred_check_branch
    %2663 = sbr.rel (0) target = $region17
  $region16: #{discriminator_x.1} parent=0 // pred_region
    _
  $region17: #{discriminator_x.1} parent=0 // pred_fallthru
    _

</llo_original>
